<compile_context>
chip_gen: v7x
topology: tpu7x:2x2x1
jax: 0.10.0
libtpu: 0.0.40
codegen_flags: <defaults>
</compile_context>

<pallas_src>
import functools

import jax
import jax.numpy as jnp
import numpy as np
from jax.experimental import pallas as pl
from jax.experimental.pallas import tpu as pltpu


def lstm_kernel(x_ref, wih_ref, whh_ref, b_ref, wp_ref, bp_ref, mask_ref,
                out_ref, pred_ref, xw_ref, *, T, Bp, H):
    """One batch shard: full-T LSTM recurrence + lane-dense phase head.

    x_ref    : (T*Bp, E)     time-major, sublane-padded shard input
    wih_ref  : (E, 4H)       input->gate weights, gate cols permuted [i, f, o, g]
    whh_ref  : (H, 4H)       hidden->gate weights, same permutation
    b_ref    : (1, 4H)       b_ih + b_hh, same permutation
    wp_ref   : (H, P_pad)    phase_fc weight^T, lane-padded to 128
    bp_ref   : (1, P_pad)    phase_fc bias, lane-padded
    mask_ref : (T*Bp, 1)     mask[:, 0:1, :] time-major for this shard
    out_ref  : (T*Bp, H)     hidden states
    pred_ref : (T*Bp, P_pad) masked phase logits (lane-padded)
    xw_ref   : (T*Bp, 4H)    VMEM scratch for the batched input projection
    """
    # Prologue: one batched input projection for the whole shard (M = T*Bp),
    # bias folded in, materialized to VMEM scratch (off the serial chain).
    xw_ref[...] = (jnp.dot(x_ref[...], wih_ref[...],
                           preferred_element_type=jnp.float32)
                   + b_ref[...])                                   # (T*Bp, 4H)

    whh = whh_ref[...]                                             # (H, 4H)

    h = jnp.zeros((Bp, H), jnp.float32)
    c = jnp.zeros((Bp, H), jnp.float32)
    # T is a small static constant: fully-unrolled recurrence; only h @ W_hh
    # remains per step.  All per-step slices/stores are 8-sublane aligned.
    for t in range(T):
        row = t * Bp
        gates = xw_ref[pl.ds(row, Bp), :] + jnp.dot(
            h, whh, preferred_element_type=jnp.float32)            # (Bp, 4H)
        # Gate order [i, f, o, g]: one contiguous sigmoid pass + one tanh pass.
        ifo = jax.nn.sigmoid(gates[:, :3 * H])
        g = jnp.tanh(gates[:, 3 * H:])
        c = ifo[:, H:2 * H] * c + ifo[:, :H] * g
        h = ifo[:, 2 * H:] * jnp.tanh(c)
        out_ref[pl.ds(row, Bp), :] = h      # per-step aligned store (store slot)

    # Epilogue: lane-dense phase head batched over all T*Bp rows, masked.
    pred_ref[...] = (jnp.dot(out_ref[...], wp_ref[...],
                             preferred_element_type=jnp.float32)
                     + bp_ref[...]) * mask_ref[...]


def lstm_forward(x, mask, params, *, num_shards=2):
    """x: (B, E, T) float32; mask: (B, Cm, T) float32.

    Returns (feats (B,T,H), pred_phases (1,B,P,T)), matching the PyTorch module.
    """
    W_ih, W_hh, b, W_p, b_p = params  # PyTorch gate order [i, f, g, o]
    B, E, T = x.shape
    H = W_hh.shape[0]
    P = W_p.shape[1]

    # Batch-parallel shards (v7x megacore); fall back to 1 if B doesn't split.
    S = num_shards if (num_shards > 1 and B % num_shards == 0) else 1
    B_shard = B // S
    Bp = max(8, ((B_shard + 7) // 8) * 8)     # sublane-pad per-shard batch
    P_pad = ((P + 127) // 128) * 128          # lane-dense phase head

    # Permute gate columns [i, f, g, o] -> [i, f, o, g] so the kernel applies
    # sigmoid to one contiguous slice and tanh to the last slice.
    def perm(w):
        return jnp.concatenate(
            [w[:, :2 * H], w[:, 3 * H:4 * H], w[:, 2 * H:3 * H]], axis=1)

    W_ih_g = perm(W_ih).astype(jnp.float32)
    W_hh_g = perm(W_hh).astype(jnp.float32)
    b_g = perm(b).astype(jnp.float32)

    W_p_pad = jnp.zeros((H, P_pad), jnp.float32).at[:, :P].set(
        W_p.astype(jnp.float32))
    b_p_pad = jnp.zeros((1, P_pad), jnp.float32).at[:, :P].set(
        b_p.astype(jnp.float32))

    # (B, E, T) -> per-shard time-major, batch padded to Bp with zero rows.
    x_btE = jnp.transpose(x, (0, 2, 1)).astype(jnp.float32)          # (B, T, E)
    x_sh = x_btE.reshape(S, B_shard, T, E)
    x_sh = jnp.pad(x_sh, ((0, 0), (0, Bp - B_shard), (0, 0), (0, 0)))
    x_tm = jnp.transpose(x_sh, (0, 2, 1, 3)).reshape(S * T * Bp, E)

    m_bt1 = jnp.transpose(mask[:, 0:1, :], (0, 2, 1)).astype(jnp.float32)
    m_sh = m_bt1.reshape(S, B_shard, T, 1)
    m_sh = jnp.pad(m_sh, ((0, 0), (0, Bp - B_shard), (0, 0), (0, 0)))
    mask_tm = jnp.transpose(m_sh, (0, 2, 1, 3)).reshape(S * T * Bp, 1)

    grid_spec = pltpu.PrefetchScalarGridSpec(
        num_scalar_prefetch=0,
        grid=(S,),                                        # batch shards
        in_specs=[
            pl.BlockSpec((T * Bp, E), lambda s: (s, 0)),      # x (shard block)
            pl.BlockSpec((E, 4 * H), lambda s: (0, 0)),       # W_ih (replicated)
            pl.BlockSpec((H, 4 * H), lambda s: (0, 0)),       # W_hh (replicated)
            pl.BlockSpec((1, 4 * H), lambda s: (0, 0)),       # b_ih + b_hh
            pl.BlockSpec((H, P_pad), lambda s: (0, 0)),       # phase_fc weight^T
            pl.BlockSpec((1, P_pad), lambda s: (0, 0)),       # phase_fc bias
            pl.BlockSpec((T * Bp, 1), lambda s: (s, 0)),      # mask (shard block)
        ],
        out_specs=[
            pl.BlockSpec((T * Bp, H), lambda s: (s, 0)),      # hidden states
            pl.BlockSpec((T * Bp, P_pad), lambda s: (s, 0)),  # phase logits
        ],
        scratch_shapes=[pltpu.VMEM((T * Bp, 4 * H), jnp.float32)],  # xw
    )

    out_tm, pred_tm = pl.pallas_call(
        functools.partial(lstm_kernel, T=T, Bp=Bp, H=H),
        out_shape=(jax.ShapeDtypeStruct((S * T * Bp, H), jnp.float32),
                   jax.ShapeDtypeStruct((S * T * Bp, P_pad), jnp.float32)),
        grid_spec=grid_spec,
        compiler_params=pltpu.CompilerParams(
            dimension_semantics=("parallel",)),
    )(x_tm, W_ih_g, W_hh_g, b_g, W_p_pad, b_p_pad, mask_tm)

    # Undo the shard / sublane / lane padding.
    out_4d = out_tm.reshape(S, T, Bp, H)[:, :, :B_shard, :]      # (S, T, Bs, H)
    feats = jnp.transpose(out_4d, (0, 2, 1, 3)).reshape(B, T, H)

    pred_4d = pred_tm.reshape(S, T, Bp, P_pad)[:, :, :B_shard, :P]
    pred_bt = jnp.transpose(pred_4d, (0, 2, 1, 3)).reshape(B, T, P)
    pred_phases = jnp.transpose(pred_bt, (0, 2, 1))[None]        # (1, B, P, T)
    return feats, pred_phases


def ref_forward(x, mask, params):
    """Pure-JAX reference mirroring the PyTorch forward semantics."""
    W_ih, W_hh, b, W_p, b_p = params
    H = W_hh.shape[0]
    B = x.shape[0]
    x_bt = jnp.transpose(x, (0, 2, 1))        # (B, T, E)  == x.transpose(2, 1)

    def step(carry, x_t):
        h, c = carry
        gates = x_t @ W_ih + h @ W_hh + b[0]
        i = jax.nn.sigmoid(gates[:, :H])
        f = jax.nn.sigmoid(gates[:, H:2 * H])
        g = jnp.tanh(gates[:, 2 * H:3 * H])
        o = jax.nn.sigmoid(gates[:, 3 * H:])
        c = f * c + i * g
        h = o * jnp.tanh(c)
        return (h, c), h

    h0 = jnp.zeros((B, H), jnp.float32)
    c0 = jnp.zeros((B, H), jnp.float32)
    _, hs = jax.lax.scan(step, (h0, c0), jnp.transpose(x_bt, (1, 0, 2)))
    out = jnp.transpose(hs, (1, 0, 2))                         # (B, T, H)
    pred = out @ W_p + b_p[0]                                  # (B, T, P)
    pred = jnp.transpose(pred, (0, 2, 1)) * mask[:, 0:1, :]    # (B, P, T)
    return out, pred[None]


def make_params(key, E, H, P):
    """Deterministic init matching PyTorch default shapes/ranges (uniform +-1/sqrt)."""
    ks = jax.random.split(key, 6)
    k_lstm = 1.0 / np.sqrt(H)
    k_fc = 1.0 / np.sqrt(H)
    W_ih = jax.random.uniform(ks[0], (E, 4 * H), jnp.float32, -k_lstm, k_lstm)
    W_hh = jax.random.uniform(ks[1], (H, 4 * H), jnp.float32, -k_lstm, k_lstm)
    b_ih = jax.random.uniform(ks[2], (4 * H,), jnp.float32, -k_lstm, k_lstm)
    b_hh = jax.random.uniform(ks[3], (4 * H,), jnp.float32, -k_lstm, k_lstm)
    b = (b_ih + b_hh).reshape(1, 4 * H)
    W_p = jax.random.uniform(ks[4], (H, P), jnp.float32, -k_fc, k_fc)
    b_p = jax.random.uniform(ks[5], (1, P), jnp.float32, -k_fc, k_fc)
    return W_ih, W_hh, b, W_p, b_p


if __name__ == "__main__":
    # Small shapes implied by the module: x (B, embedding_dim, T), mask (B, *, T)
    B, E, T = 2, 16, 8          # batch, embedding_dim, sequence length
    H, P = 32, 7                # num_f_maps (hidden), num_phases

    key = jax.random.PRNGKey(0)
    k_x, k_m, k_p = jax.random.split(key, 3)
    x = jax.random.normal(k_x, (B, E, T), jnp.float32)
    mask = (jax.random.uniform(k_m, (B, 3, T)) > 0.2).astype(jnp.float32)
    params = make_params(k_p, E, H, P)

    feats, pred_phases = lstm_forward(x, mask, params)
    feats = jax.block_until_ready(feats)
    pred_phases = jax.block_until_ready(pred_phases)

    feats_ref, pred_ref = ref_forward(x, mask, params)
    np.testing.assert_allclose(np.asarray(feats), np.asarray(feats_ref),
                               rtol=1e-5, atol=1e-5)
    np.testing.assert_allclose(np.asarray(pred_phases), np.asarray(pred_ref),
                               rtol=1e-5, atol=1e-5)
    assert feats.shape == (B, T, H)
    assert pred_phases.shape == (1, B, P, T)

    # pred_steps is [] in the reference module (steps=False); nothing to compute.
    print("KERNEL_OK")
</pallas_src>

<mosaic_0001>
module attributes {stable_mosaic.version = 11 : i64} {
  func.func @lstm_kernel(%arg0: i32, %arg1: memref<64x16xf32, #tpu.memory_space<vmem>>, %arg2: memref<16x128xf32, #tpu.memory_space<vmem>>, %arg3: memref<32x128xf32, #tpu.memory_space<vmem>>, %arg4: memref<1x128xf32, #tpu.memory_space<vmem>>, %arg5: memref<32x128xf32, #tpu.memory_space<vmem>>, %arg6: memref<1x128xf32, #tpu.memory_space<vmem>>, %arg7: memref<64x1xf32, #tpu.memory_space<vmem>>, %arg8: memref<64x32xf32, #tpu.memory_space<vmem>>, %arg9: memref<64x128xf32, #tpu.memory_space<vmem>>, %arg10: memref<64x128xf32, #tpu.memory_space<vmem>>) attributes {dimension_semantics = [#tpu.dimension_semantics<parallel>], iteration_bounds = array<i64: 2>, scalar_prefetch = 0 : i64, scratch_operands = 1 : i64, tpu.core_type = #tpu.core_type<tc>, window_params = [{transform_indices = @transform_0, window_bounds = array<i64: 64, 16>}, {pipeline_mode = #tpu.pipeline_mode<synchronous>, transform_indices = @transform_1, window_bounds = array<i64: 16, 128>}, {pipeline_mode = #tpu.pipeline_mode<synchronous>, transform_indices = @transform_2, window_bounds = array<i64: 32, 128>}, {pipeline_mode = #tpu.pipeline_mode<synchronous>, transform_indices = @transform_3, window_bounds = array<i64: 1, 128>}, {pipeline_mode = #tpu.pipeline_mode<synchronous>, transform_indices = @transform_4, window_bounds = array<i64: 32, 128>}, {pipeline_mode = #tpu.pipeline_mode<synchronous>, transform_indices = @transform_5, window_bounds = array<i64: 1, 128>}, {transform_indices = @transform_6, window_bounds = array<i64: 64, 1>}, {transform_indices = @transform_7, window_bounds = array<i64: 64, 32>}, {transform_indices = @transform_8, window_bounds = array<i64: 64, 128>}]} {
    %c0 = arith.constant 0 : index
    %c0_0 = arith.constant 0 : index
    %0 = vector.load %arg1[%c0, %c0_0] : memref<64x16xf32, #tpu.memory_space<vmem>>, vector<64x16xf32>
    %c0_1 = arith.constant 0 : index
    %c0_2 = arith.constant 0 : index
    %1 = vector.load %arg2[%c0_1, %c0_2] : memref<16x128xf32, #tpu.memory_space<vmem>>, vector<16x128xf32>
    %cst = arith.constant dense<0.000000e+00> : vector<64x128xf32>
    %2 = tpu.matmul %0, %1, %cst {dimension_numbers = #tpu.dot_dimension_numbers<[1], [0], [0], [1], [0, 0, 1, 1], [], []>} : vector<64x16xf32>, vector<16x128xf32>, vector<64x128xf32> -> vector<64x128xf32>
    %c0_3 = arith.constant 0 : index
    %c0_4 = arith.constant 0 : index
    %3 = vector.load %arg4[%c0_3, %c0_4] : memref<1x128xf32, #tpu.memory_space<vmem>>, vector<1x128xf32>
    %4 = vector.broadcast %3 : vector<1x128xf32> to vector<64x128xf32>
    %5 = arith.addf %2, %4 : vector<64x128xf32>
    %c0_5 = arith.constant 0 : index
    %c0_6 = arith.constant 0 : index
    %6 = vector.load %arg10[%c0_5, %c0_6] : memref<64x128xf32, #tpu.memory_space<vmem>>, vector<64x128xf32>
    tpu.vector_store %arg10[%c0_5, %c0_6], %5 {strides = array<i32>} : memref<64x128xf32, #tpu.memory_space<vmem>>, vector<64x128xf32>,
    %c0_7 = arith.constant 0 : index
    %c0_8 = arith.constant 0 : index
    %7 = vector.load %arg3[%c0_7, %c0_8] : memref<32x128xf32, #tpu.memory_space<vmem>>, vector<32x128xf32>
    %cst_9 = arith.constant 0.000000e+00 : f32
    %8 = vector.broadcast %cst_9 : f32 to vector<8x32xf32>
    %cst_10 = arith.constant 0.000000e+00 : f32
    %9 = vector.broadcast %cst_10 : f32 to vector<8x32xf32>
    %c0_11 = arith.constant 0 : index
    %c0_12 = arith.constant 0 : index
    %10 = vector.load %arg10[%c0_11, %c0_12] : memref<64x128xf32, #tpu.memory_space<vmem>>, vector<8x128xf32>
    %cst_13 = arith.constant dense<0.000000e+00> : vector<8x128xf32>
    %11 = tpu.matmul %8, %7, %cst_13 {dimension_numbers = #tpu.dot_dimension_numbers<[1], [0], [0], [1], [0, 0, 1, 1], [], []>} : vector<8x32xf32>, vector<32x128xf32>, vector<8x128xf32> -> vector<8x128xf32>
    %12 = arith.addf %10, %11 : vector<8x128xf32>
    %13 = vector.extract_strided_slice %12 {offsets = [0, 0], sizes = [8, 96], strides = [1, 1]} : vector<8x128xf32> to vector<8x96xf32>
    %14 = arith.negf %13 : vector<8x96xf32>
    %15 = math.exp %14 : vector<8x96xf32>
    %cst_14 = arith.constant 1.000000e+00 : f32
    %16 = vector.broadcast %cst_14 : f32 to vector<8x96xf32>
    %17 = arith.addf %16, %15 : vector<8x96xf32>
    %18 = arith.divf %16, %17 : vector<8x96xf32>
    %19 = vector.extract_strided_slice %12 {offsets = [0, 96], sizes = [8, 32], strides = [1, 1]} : vector<8x128xf32> to vector<8x32xf32>
    %20 = math.tanh %19 : vector<8x32xf32>
    %21 = vector.extract_strided_slice %18 {offsets = [0, 32], sizes = [8, 32], strides = [1, 1]} : vector<8x96xf32> to vector<8x32xf32>
    %22 = arith.mulf %21, %9 : vector<8x32xf32>
    %23 = vector.extract_strided_slice %18 {offsets = [0, 0], sizes = [8, 32], strides = [1, 1]} : vector<8x96xf32> to vector<8x32xf32>
    %24 = arith.mulf %23, %20 : vector<8x32xf32>
    %25 = arith.addf %22, %24 : vector<8x32xf32>
    %26 = vector.extract_strided_slice %18 {offsets = [0, 64], sizes = [8, 32], strides = [1, 1]} : vector<8x96xf32> to vector<8x32xf32>
    %27 = math.tanh %25 : vector<8x32xf32>
    %28 = arith.mulf %26, %27 : vector<8x32xf32>
    %c0_15 = arith.constant 0 : index
    %c0_16 = arith.constant 0 : index
    %29 = vector.load %arg8[%c0_15, %c0_16] : memref<64x32xf32, #tpu.memory_space<vmem>>, vector<8x32xf32>
    tpu.vector_store %arg8[%c0_15, %c0_16], %28 {strides = array<i32>} : memref<64x32xf32, #tpu.memory_space<vmem>>, vector<8x32xf32>,
    %c8 = arith.constant 8 : index
    %c0_17 = arith.constant 0 : index
    %30 = vector.load %arg10[%c8, %c0_17] : memref<64x128xf32, #tpu.memory_space<vmem>>, vector<8x128xf32>
    %cst_18 = arith.constant dense<0.000000e+00> : vector<8x128xf32>
    %31 = tpu.matmul %28, %7, %cst_18 {dimension_numbers = #tpu.dot_dimension_numbers<[1], [0], [0], [1], [0, 0, 1, 1], [], []>} : vector<8x32xf32>, vector<32x128xf32>, vector<8x128xf32> -> vector<8x128xf32>
    %32 = arith.addf %30, %31 : vector<8x128xf32>
    %33 = vector.extract_strided_slice %32 {offsets = [0, 0], sizes = [8, 96], strides = [1, 1]} : vector<8x128xf32> to vector<8x96xf32>
    %34 = arith.negf %33 : vector<8x96xf32>
    %35 = math.exp %34 : vector<8x96xf32>
    %cst_19 = arith.constant 1.000000e+00 : f32
    %36 = vector.broadcast %cst_19 : f32 to vector<8x96xf32>
    %37 = arith.addf %36, %35 : vector<8x96xf32>
    %38 = arith.divf %36, %37 : vector<8x96xf32>
    %39 = vector.extract_strided_slice %32 {offsets = [0, 96], sizes = [8, 32], strides = [1, 1]} : vector<8x128xf32> to vector<8x32xf32>
    %40 = math.tanh %39 : vector<8x32xf32>
    %41 = vector.extract_strided_slice %38 {offsets = [0, 32], sizes = [8, 32], strides = [1, 1]} : vector<8x96xf32> to vector<8x32xf32>
    %42 = arith.mulf %41, %25 : vector<8x32xf32>
    %43 = vector.extract_strided_slice %38 {offsets = [0, 0], sizes = [8, 32], strides = [1, 1]} : vector<8x96xf32> to vector<8x32xf32>
    %44 = arith.mulf %43, %40 : vector<8x32xf32>
    %45 = arith.addf %42, %44 : vector<8x32xf32>
    %46 = vector.extract_strided_slice %38 {offsets = [0, 64], sizes = [8, 32], strides = [1, 1]} : vector<8x96xf32> to vector<8x32xf32>
    %47 = math.tanh %45 : vector<8x32xf32>
    %48 = arith.mulf %46, %47 : vector<8x32xf32>
    %c8_20 = arith.constant 8 : index
    %c0_21 = arith.constant 0 : index
    %49 = vector.load %arg8[%c8_20, %c0_21] : memref<64x32xf32, #tpu.memory_space<vmem>>, vector<8x32xf32>
    tpu.vector_store %arg8[%c8_20, %c0_21], %48 {strides = array<i32>} : memref<64x32xf32, #tpu.memory_space<vmem>>, vector<8x32xf32>,
    %c16 = arith.constant 16 : index
    %c0_22 = arith.constant 0 : index
    %50 = vector.load %arg10[%c16, %c0_22] : memref<64x128xf32, #tpu.memory_space<vmem>>, vector<8x128xf32>
    %cst_23 = arith.constant dense<0.000000e+00> : vector<8x128xf32>
    %51 = tpu.matmul %48, %7, %cst_23 {dimension_numbers = #tpu.dot_dimension_numbers<[1], [0], [0], [1], [0, 0, 1, 1], [], []>} : vector<8x32xf32>, vector<32x128xf32>, vector<8x128xf32> -> vector<8x128xf32>
    %52 = arith.addf %50, %51 : vector<8x128xf32>
    %53 = vector.extract_strided_slice %52 {offsets = [0, 0], sizes = [8, 96], strides = [1, 1]} : vector<8x128xf32> to vector<8x96xf32>
    %54 = arith.negf %53 : vector<8x96xf32>
    %55 = math.exp %54 : vector<8x96xf32>
    %cst_24 = arith.constant 1.000000e+00 : f32
    %56 = vector.broadcast %cst_24 : f32 to vector<8x96xf32>
    %57 = arith.addf %56, %55 : vector<8x96xf32>
    %58 = arith.divf %56, %57 : vector<8x96xf32>
    %59 = vector.extract_strided_slice %52 {offsets = [0, 96], sizes = [8, 32], strides = [1, 1]} : vector<8x128xf32> to vector<8x32xf32>
    %60 = math.tanh %59 : vector<8x32xf32>
    %61 = vector.extract_strided_slice %58 {offsets = [0, 32], sizes = [8, 32], strides = [1, 1]} : vector<8x96xf32> to vector<8x32xf32>
    %62 = arith.mulf %61, %45 : vector<8x32xf32>
    %63 = vector.extract_strided_slice %58 {offsets = [0, 0], sizes = [8, 32], strides = [1, 1]} : vector<8x96xf32> to vector<8x32xf32>
    %64 = arith.mulf %63, %60 : vector<8x32xf32>
    %65 = arith.addf %62, %64 : vector<8x32xf32>
    %66 = vector.extract_strided_slice %58 {offsets = [0, 64], sizes = [8, 32], strides = [1, 1]} : vector<8x96xf32> to vector<8x32xf32>
    %67 = math.tanh %65 : vector<8x32xf32>
    %68 = arith.mulf %66, %67 : vector<8x32xf32>
    %c16_25 = arith.constant 16 : index
    %c0_26 = arith.constant 0 : index
    %69 = vector.load %arg8[%c16_25, %c0_26] : memref<64x32xf32, #tpu.memory_space<vmem>>, vector<8x32xf32>
    tpu.vector_store %arg8[%c16_25, %c0_26], %68 {strides = array<i32>} : memref<64x32xf32, #tpu.memory_space<vmem>>, vector<8x32xf32>,
    %c24 = arith.constant 24 : index
    %c0_27 = arith.constant 0 : index
    %70 = vector.load %arg10[%c24, %c0_27] : memref<64x128xf32, #tpu.memory_space<vmem>>, vector<8x128xf32>
    %cst_28 = arith.constant dense<0.000000e+00> : vector<8x128xf32>
    %71 = tpu.matmul %68, %7, %cst_28 {dimension_numbers = #tpu.dot_dimension_numbers<[1], [0], [0], [1], [0, 0, 1, 1], [], []>} : vector<8x32xf32>, vector<32x128xf32>, vector<8x128xf32> -> vector<8x128xf32>
    %72 = arith.addf %70, %71 : vector<8x128xf32>
    %73 = vector.extract_strided_slice %72 {offsets = [0, 0], sizes = [8, 96], strides = [1, 1]} : vector<8x128xf32> to vector<8x96xf32>
    %74 = arith.negf %73 : vector<8x96xf32>
    %75 = math.exp %74 : vector<8x96xf32>
    %cst_29 = arith.constant 1.000000e+00 : f32
    %76 = vector.broadcast %cst_29 : f32 to vector<8x96xf32>
    %77 = arith.addf %76, %75 : vector<8x96xf32>
    %78 = arith.divf %76, %77 : vector<8x96xf32>
    %79 = vector.extract_strided_slice %72 {offsets = [0, 96], sizes = [8, 32], strides = [1, 1]} : vector<8x128xf32> to vector<8x32xf32>
    %80 = math.tanh %79 : vector<8x32xf32>
    %81 = vector.extract_strided_slice %78 {offsets = [0, 32], sizes = [8, 32], strides = [1, 1]} : vector<8x96xf32> to vector<8x32xf32>
    %82 = arith.mulf %81, %65 : vector<8x32xf32>
    %83 = vector.extract_strided_slice %78 {offsets = [0, 0], sizes = [8, 32], strides = [1, 1]} : vector<8x96xf32> to vector<8x32xf32>
    %84 = arith.mulf %83, %80 : vector<8x32xf32>
    %85 = arith.addf %82, %84 : vector<8x32xf32>
    %86 = vector.extract_strided_slice %78 {offsets = [0, 64], sizes = [8, 32], strides = [1, 1]} : vector<8x96xf32> to vector<8x32xf32>
    %87 = math.tanh %85 : vector<8x32xf32>
    %88 = arith.mulf %86, %87 : vector<8x32xf32>
    %c24_30 = arith.constant 24 : index
    %c0_31 = arith.constant 0 : index
    %89 = vector.load %arg8[%c24_30, %c0_31] : memref<64x32xf32, #tpu.memory_space<vmem>>, vector<8x32xf32>
    tpu.vector_store %arg8[%c24_30, %c0_31], %88 {strides = array<i32>} : memref<64x32xf32, #tpu.memory_space<vmem>>, vector<8x32xf32>,
    %c32 = arith.constant 32 : index
    %c0_32 = arith.constant 0 : index
    %90 = vector.load %arg10[%c32, %c0_32] : memref<64x128xf32, #tpu.memory_space<vmem>>, vector<8x128xf32>
    %cst_33 = arith.constant dense<0.000000e+00> : vector<8x128xf32>
    %91 = tpu.matmul %88, %7, %cst_33 {dimension_numbers = #tpu.dot_dimension_numbers<[1], [0], [0], [1], [0, 0, 1, 1], [], []>} : vector<8x32xf32>, vector<32x128xf32>, vector<8x128xf32> -> vector<8x128xf32>
    %92 = arith.addf %90, %91 : vector<8x128xf32>
    %93 = vector.extract_strided_slice %92 {offsets = [0, 0], sizes = [8, 96], strides = [1, 1]} : vector<8x128xf32> to vector<8x96xf32>
    %94 = arith.negf %93 : vector<8x96xf32>
    %95 = math.exp %94 : vector<8x96xf32>
    %cst_34 = arith.constant 1.000000e+00 : f32
    %96 = vector.broadcast %cst_34 : f32 to vector<8x96xf32>
    %97 = arith.addf %96, %95 : vector<8x96xf32>
    %98 = arith.divf %96, %97 : vector<8x96xf32>
    %99 = vector.extract_strided_slice %92 {offsets = [0, 96], sizes = [8, 32], strides = [1, 1]} : vector<8x128xf32> to vector<8x32xf32>
    %100 = math.tanh %99 : vector<8x32xf32>
    %101 = vector.extract_strided_slice %98 {offsets = [0, 32], sizes = [8, 32], strides = [1, 1]} : vector<8x96xf32> to vector<8x32xf32>
    %102 = arith.mulf %101, %85 : vector<8x32xf32>
    %103 = vector.extract_strided_slice %98 {offsets = [0, 0], sizes = [8, 32], strides = [1, 1]} : vector<8x96xf32> to vector<8x32xf32>
    %104 = arith.mulf %103, %100 : vector<8x32xf32>
    %105 = arith.addf %102, %104 : vector<8x32xf32>
    %106 = vector.extract_strided_slice %98 {offsets = [0, 64], sizes = [8, 32], strides = [1, 1]} : vector<8x96xf32> to vector<8x32xf32>
    %107 = math.tanh %105 : vector<8x32xf32>
    %108 = arith.mulf %106, %107 : vector<8x32xf32>
    %c32_35 = arith.constant 32 : index
    %c0_36 = arith.constant 0 : index
    %109 = vector.load %arg8[%c32_35, %c0_36] : memref<64x32xf32, #tpu.memory_space<vmem>>, vector<8x32xf32>
    tpu.vector_store %arg8[%c32_35, %c0_36], %108 {strides = array<i32>} : memref<64x32xf32, #tpu.memory_space<vmem>>, vector<8x32xf32>,
    %c40 = arith.constant 40 : index
    %c0_37 = arith.constant 0 : index
    %110 = vector.load %arg10[%c40, %c0_37] : memref<64x128xf32, #tpu.memory_space<vmem>>, vector<8x128xf32>
    %cst_38 = arith.constant dense<0.000000e+00> : vector<8x128xf32>
    %111 = tpu.matmul %108, %7, %cst_38 {dimension_numbers = #tpu.dot_dimension_numbers<[1], [0], [0], [1], [0, 0, 1, 1], [], []>} : vector<8x32xf32>, vector<32x128xf32>, vector<8x128xf32> -> vector<8x128xf32>
    %112 = arith.addf %110, %111 : vector<8x128xf32>
    %113 = vector.extract_strided_slice %112 {offsets = [0, 0], sizes = [8, 96], strides = [1, 1]} : vector<8x128xf32> to vector<8x96xf32>
    %114 = arith.negf %113 : vector<8x96xf32>
    %115 = math.exp %114 : vector<8x96xf32>
    %cst_39 = arith.constant 1.000000e+00 : f32
    %116 = vector.broadcast %cst_39 : f32 to vector<8x96xf32>
    %117 = arith.addf %116, %115 : vector<8x96xf32>
    %118 = arith.divf %116, %117 : vector<8x96xf32>
    %119 = vector.extract_strided_slice %112 {offsets = [0, 96], sizes = [8, 32], strides = [1, 1]} : vector<8x128xf32> to vector<8x32xf32>
    %120 = math.tanh %119 : vector<8x32xf32>
    %121 = vector.extract_strided_slice %118 {offsets = [0, 32], sizes = [8, 32], strides = [1, 1]} : vector<8x96xf32> to vector<8x32xf32>
    %122 = arith.mulf %121, %105 : vector<8x32xf32>
    %123 = vector.extract_strided_slice %118 {offsets = [0, 0], sizes = [8, 32], strides = [1, 1]} : vector<8x96xf32> to vector<8x32xf32>
    %124 = arith.mulf %123, %120 : vector<8x32xf32>
    %125 = arith.addf %122, %124 : vector<8x32xf32>
    %126 = vector.extract_strided_slice %118 {offsets = [0, 64], sizes = [8, 32], strides = [1, 1]} : vector<8x96xf32> to vector<8x32xf32>
    %127 = math.tanh %125 : vector<8x32xf32>
    %128 = arith.mulf %126, %127 : vector<8x32xf32>
    %c40_40 = arith.constant 40 : index
    %c0_41 = arith.constant 0 : index
    %129 = vector.load %arg8[%c40_40, %c0_41] : memref<64x32xf32, #tpu.memory_space<vmem>>, vector<8x32xf32>
    tpu.vector_store %arg8[%c40_40, %c0_41], %128 {strides = array<i32>} : memref<64x32xf32, #tpu.memory_space<vmem>>, vector<8x32xf32>,
    %c48 = arith.constant 48 : index
    %c0_42 = arith.constant 0 : index
    %130 = vector.load %arg10[%c48, %c0_42] : memref<64x128xf32, #tpu.memory_space<vmem>>, vector<8x128xf32>
    %cst_43 = arith.constant dense<0.000000e+00> : vector<8x128xf32>
    %131 = tpu.matmul %128, %7, %cst_43 {dimension_numbers = #tpu.dot_dimension_numbers<[1], [0], [0], [1], [0, 0, 1, 1], [], []>} : vector<8x32xf32>, vector<32x128xf32>, vector<8x128xf32> -> vector<8x128xf32>
    %132 = arith.addf %130, %131 : vector<8x128xf32>
    %133 = vector.extract_strided_slice %132 {offsets = [0, 0], sizes = [8, 96], strides = [1, 1]} : vector<8x128xf32> to vector<8x96xf32>
    %134 = arith.negf %133 : vector<8x96xf32>
    %135 = math.exp %134 : vector<8x96xf32>
    %cst_44 = arith.constant 1.000000e+00 : f32
    %136 = vector.broadcast %cst_44 : f32 to vector<8x96xf32>
    %137 = arith.addf %136, %135 : vector<8x96xf32>
    %138 = arith.divf %136, %137 : vector<8x96xf32>
    %139 = vector.extract_strided_slice %132 {offsets = [0, 96], sizes = [8, 32], strides = [1, 1]} : vector<8x128xf32> to vector<8x32xf32>
    %140 = math.tanh %139 : vector<8x32xf32>
    %141 = vector.extract_strided_slice %138 {offsets = [0, 32], sizes = [8, 32], strides = [1, 1]} : vector<8x96xf32> to vector<8x32xf32>
    %142 = arith.mulf %141, %125 : vector<8x32xf32>
    %143 = vector.extract_strided_slice %138 {offsets = [0, 0], sizes = [8, 32], strides = [1, 1]} : vector<8x96xf32> to vector<8x32xf32>
    %144 = arith.mulf %143, %140 : vector<8x32xf32>
    %145 = arith.addf %142, %144 : vector<8x32xf32>
    %146 = vector.extract_strided_slice %138 {offsets = [0, 64], sizes = [8, 32], strides = [1, 1]} : vector<8x96xf32> to vector<8x32xf32>
    %147 = math.tanh %145 : vector<8x32xf32>
    %148 = arith.mulf %146, %147 : vector<8x32xf32>
    %c48_45 = arith.constant 48 : index
    %c0_46 = arith.constant 0 : index
    %149 = vector.load %arg8[%c48_45, %c0_46] : memref<64x32xf32, #tpu.memory_space<vmem>>, vector<8x32xf32>
    tpu.vector_store %arg8[%c48_45, %c0_46], %148 {strides = array<i32>} : memref<64x32xf32, #tpu.memory_space<vmem>>, vector<8x32xf32>,
    %c56 = arith.constant 56 : index
    %c0_47 = arith.constant 0 : index
    %150 = vector.load %arg10[%c56, %c0_47] : memref<64x128xf32, #tpu.memory_space<vmem>>, vector<8x128xf32>
    %cst_48 = arith.constant dense<0.000000e+00> : vector<8x128xf32>
    %151 = tpu.matmul %148, %7, %cst_48 {dimension_numbers = #tpu.dot_dimension_numbers<[1], [0], [0], [1], [0, 0, 1, 1], [], []>} : vector<8x32xf32>, vector<32x128xf32>, vector<8x128xf32> -> vector<8x128xf32>
    %152 = arith.addf %150, %151 : vector<8x128xf32>
    %153 = vector.extract_strided_slice %152 {offsets = [0, 0], sizes = [8, 96], strides = [1, 1]} : vector<8x128xf32> to vector<8x96xf32>
    %154 = arith.negf %153 : vector<8x96xf32>
    %155 = math.exp %154 : vector<8x96xf32>
    %cst_49 = arith.constant 1.000000e+00 : f32
    %156 = vector.broadcast %cst_49 : f32 to vector<8x96xf32>
    %157 = arith.addf %156, %155 : vector<8x96xf32>
    %158 = arith.divf %156, %157 : vector<8x96xf32>
    %159 = vector.extract_strided_slice %152 {offsets = [0, 96], sizes = [8, 32], strides = [1, 1]} : vector<8x128xf32> to vector<8x32xf32>
    %160 = math.tanh %159 : vector<8x32xf32>
    %161 = vector.extract_strided_slice %158 {offsets = [0, 32], sizes = [8, 32], strides = [1, 1]} : vector<8x96xf32> to vector<8x32xf32>
    %162 = arith.mulf %161, %145 : vector<8x32xf32>
    %163 = vector.extract_strided_slice %158 {offsets = [0, 0], sizes = [8, 32], strides = [1, 1]} : vector<8x96xf32> to vector<8x32xf32>
    %164 = arith.mulf %163, %160 : vector<8x32xf32>
    %165 = arith.addf %162, %164 : vector<8x32xf32>
    %166 = vector.extract_strided_slice %158 {offsets = [0, 64], sizes = [8, 32], strides = [1, 1]} : vector<8x96xf32> to vector<8x32xf32>
    %167 = math.tanh %165 : vector<8x32xf32>
    %168 = arith.mulf %166, %167 : vector<8x32xf32>
    %c56_50 = arith.constant 56 : index
    %c0_51 = arith.constant 0 : index
    %169 = vector.load %arg8[%c56_50, %c0_51] : memref<64x32xf32, #tpu.memory_space<vmem>>, vector<8x32xf32>
    tpu.vector_store %arg8[%c56_50, %c0_51], %168 {strides = array<i32>} : memref<64x32xf32, #tpu.memory_space<vmem>>, vector<8x32xf32>,
    %c0_52 = arith.constant 0 : index
    %c0_53 = arith.constant 0 : index
    %170 = vector.load %arg8[%c0_52, %c0_53] : memref<64x32xf32, #tpu.memory_space<vmem>>, vector<64x32xf32>
    %c0_54 = arith.constant 0 : index
    %c0_55 = arith.constant 0 : index
    %171 = vector.load %arg5[%c0_54, %c0_55] : memref<32x128xf32, #tpu.memory_space<vmem>>, vector<32x128xf32>
    %cst_56 = arith.constant dense<0.000000e+00> : vector<64x128xf32>
    %172 = tpu.matmul %170, %171, %cst_56 {dimension_numbers = #tpu.dot_dimension_numbers<[1], [0], [0], [1], [0, 0, 1, 1], [], []>} : vector<64x32xf32>, vector<32x128xf32>, vector<64x128xf32> -> vector<64x128xf32>
    %c0_57 = arith.constant 0 : index
    %c0_58 = arith.constant 0 : index
    %173 = vector.load %arg6[%c0_57, %c0_58] : memref<1x128xf32, #tpu.memory_space<vmem>>, vector<1x128xf32>
    %174 = vector.broadcast %173 : vector<1x128xf32> to vector<64x128xf32>
    %175 = arith.addf %172, %174 : vector<64x128xf32>
    %c0_59 = arith.constant 0 : index
    %c0_60 = arith.constant 0 : index
    %176 = vector.load %arg7[%c0_59, %c0_60] : memref<64x1xf32, #tpu.memory_space<vmem>>, vector<64x1xf32>
    %177 = vector.broadcast %176 : vector<64x1xf32> to vector<64x128xf32>
    %178 = arith.mulf %175, %177 : vector<64x128xf32>
    %c0_61 = arith.constant 0 : index
    %c0_62 = arith.constant 0 : index
    %179 = vector.load %arg9[%c0_61, %c0_62] : memref<64x128xf32, #tpu.memory_space<vmem>>, vector<64x128xf32>
    tpu.vector_store %arg9[%c0_61, %c0_62], %178 {strides = array<i32>} : memref<64x128xf32, #tpu.memory_space<vmem>>, vector<64x128xf32>,
    return
  }
  func.func @transform_0(%arg0: i32) -> (i32, i32) {
    %c0_i32 = arith.constant 0 : i32
    %c0_i32_0 = arith.constant 0 : i32
    return %arg0, %c0_i32 : i32, i32
  }
  func.func @transform_1(%arg0: i32) -> (i32, i32) {
    %c0_i32 = arith.constant 0 : i32
    %c0_i32_0 = arith.constant 0 : i32
    %c0_i32_1 = arith.constant 0 : i32
    return %c0_i32, %c0_i32_0 : i32, i32
  }
  func.func @transform_2(%arg0: i32) -> (i32, i32) {
    %c0_i32 = arith.constant 0 : i32
    %c0_i32_0 = arith.constant 0 : i32
    %c0_i32_1 = arith.constant 0 : i32
    return %c0_i32, %c0_i32_0 : i32, i32
  }
  func.func @transform_3(%arg0: i32) -> (i32, i32) {
    %c0_i32 = arith.constant 0 : i32
    %c0_i32_0 = arith.constant 0 : i32
    %c0_i32_1 = arith.constant 0 : i32
    return %c0_i32, %c0_i32_0 : i32, i32
  }
  func.func @transform_4(%arg0: i32) -> (i32, i32) {
    %c0_i32 = arith.constant 0 : i32
    %c0_i32_0 = arith.constant 0 : i32
    %c0_i32_1 = arith.constant 0 : i32
    return %c0_i32, %c0_i32_0 : i32, i32
  }
  func.func @transform_5(%arg0: i32) -> (i32, i32) {
    %c0_i32 = arith.constant 0 : i32
    %c0_i32_0 = arith.constant 0 : i32
    %c0_i32_1 = arith.constant 0 : i32
    return %c0_i32, %c0_i32_0 : i32, i32
  }
  func.func @transform_6(%arg0: i32) -> (i32, i32) {
    %c0_i32 = arith.constant 0 : i32
    %c0_i32_0 = arith.constant 0 : i32
    return %arg0, %c0_i32 : i32, i32
  }
  func.func @transform_7(%arg0: i32) -> (i32, i32) {
    %c0_i32 = arith.constant 0 : i32
    %c0_i32_0 = arith.constant 0 : i32
    return %arg0, %c0_i32 : i32, i32
  }
  func.func @transform_8(%arg0: i32) -> (i32, i32) {
    %c0_i32 = arith.constant 0 : i32
    %c0_i32_0 = arith.constant 0 : i32
    return %arg0, %c0_i32 : i32, i32
  }
}

</mosaic_0001>

<llo_original>
// kernel: tpu_custom_call.1
$region0: #{tpu_custom_call.1}
  #allocation0 [shape = 'u32[]', space=smem, size = 0x4, offset = 0x4, fixed_abs, tag = 'smem constant byte address 0x4 - core index']
  #allocation1 [shape = 'u32[144,128]{1,0:T(1,128)}', space=vmem, size = 0x12000, scoped, tag = 'internal scratch']
  #allocation2 [shape = 'f32[64,128]{1,0:T(8,128)}', space=vmem, size = 0x8000, scoped, tag = 'scratch operand']
  %s0 = inlined_call_operand.vmem [shape: f32[128,16], index: 0, kind: input, shape index: {}]
  %s1 = inlined_call_operand.vmem [shape: f32[16,128], index: 1, kind: input, shape index: {}]
  %s2 = inlined_call_operand.vmem [shape: f32[32,128], index: 2, kind: input, shape index: {}]
  %s3 = inlined_call_operand.vmem [shape: f32[1,128], index: 3, kind: input, shape index: {}]
  %s4 = inlined_call_operand.vmem [shape: f32[32,128], index: 4, kind: input, shape index: {}]
  %s5 = inlined_call_operand.vmem [shape: f32[1,128], index: 5, kind: input, shape index: {}]
  %s6 = inlined_call_operand.vmem [shape: f32[128,1], index: 6, kind: input, shape index: {}]
  %s7 = inlined_call_operand.vmem [shape: f32[128,32], index: 7, kind: output, shape index: {0}]
  %s8 = inlined_call_operand.hbm [shape: f32[128,128], index: 8, kind: output, shape index: {1}]
  %9 = xla_tuple %s7, %s8
  %s10 = sld [smem:[#allocation0]]
  $region69: #{tpu_custom_call.1} parent=0
    _
  %s12 = ssub.s32 1, %s10
  %s13 = scalar_select 0, %s12, %s10
  $region1: #{tpu_custom_call.1} parent=0
    #allocation3 [shape = 'u8[65536]{0}', space=vmem, size = 0x10000, scoped, tag = 'output window, operand 1']
    #allocation4 [shape = 's32[2]{0}', space=sflag, size = 0x8, scoped, tag = 'scoped memory for tpu_custom_call.1']
    %14 = vsyncpa [#allocation4], 0
    %s15 = scalar_lea.sflag [#allocation4], 1
    %16 = vsyncpa %s15, 0
    loop: start=0, step=1, limit=4
    $region2: #{tpu_custom_call.1} parent=1 // loop_pre_header
      _
    $region3: #{tpu_custom_call.1} parent=1 // loop_header
      %s18 = sphi 0, %s22
      %p19 = scmp.ge.s32.totalorder %s18, 4
      %s28 = sphi 0, %s30
      %s31 = sphi 0, %s28
      %s32 = sphi 0, %s31
      %s48 = sphi 0, %s32
      %s52 = sphi 0, %s52
      %s54 = sphi 0, %s52
      %s55 = sphi 0, %s54
      %s69 = sphi 0, %s55
      %s73 = sphi 0, %s73
      %s75 = sphi 0, %s73
      %s76 = sphi 0, %s75
      %s90 = sphi 0, %s76
      %s94 = sphi 0, %s94
      %s96 = sphi 0, %s94
      %s97 = sphi 0, %s96
      %s111 = sphi 0, %s97
      %s115 = sphi 0, %s115
      %s117 = sphi 0, %s115
      %s118 = sphi 0, %s117
      %s132 = sphi 0, %s118
      %s136 = sphi 0, %s136
      %s138 = sphi 0, %s136
      %s139 = sphi 0, %s138
      %s153 = sphi 0, %s139
      %s159 = sphi 0, %s161
      %s162 = sphi 0, %s159
      %s163 = sphi 0, %s162
      %s179 = sphi 0, %s163
      %s185 = sphi 0, %s187
      %s188 = sphi 0, %s185
      %s189 = sphi 0, %s188
      %s205 = sphi 0, %s189
      %s211 = sphi 0, %s213
      %s214 = sphi 0, %s211
      %s215 = sphi 0, %s214
      %s231 = sphi 0, %s215
    $region4: #{tpu_custom_call.1} parent=1 // loop_header_branch
      %21 = sbr.rel (%p19) target = $region8
    $region5: #{tpu_custom_call.1} parent=1 // loop_body
      %s23 = ssub.s32 %s18, 1
      %s24 = ssub.s32 %s18, 2
      %s25 = sadd.s32 %s18, 1
      %s26 = ssub.s32 %s18, %s25
      %p27 = scmp.eq.s32.totalorder %s26, 0
      %s29 = sadd.s32 %s28, 1
      %s30 = scalar_select %p27, %s28, %s29
      %p33 = pneg %p27
      %p34 = scmp.eq.s32.totalorder %s18, 1
      %p35 = por %p33, %p34
      %p36 = scmp.ne.s32.totalorder %s28, %s31
      %p37 = scmp.eq.s32.totalorder %s18, 0
      %p38 = por %p36, %p37
      %p39 = scmp.ne.s32.totalorder %s28, %s31
      %p40 = scmp.eq.s32.totalorder %s23, 1
      %p41 = por %p39, %p40
      %p42 = scmp.ne.s32.totalorder %s31, %s32
      %p43 = scmp.eq.s32.totalorder %s23, 0
      %p44 = por %p42, %p43
      %p45 = scmp.ne.s32.totalorder %s31, %s32
      %p46 = scmp.eq.s32.totalorder %s24, 1
      %p47 = por %p45, %p46
      %p49 = scmp.ne.s32.totalorder %s32, %s48
      %p50 = scmp.eq.s32.totalorder %s24, 0
      %p51 = por %p49, %p50
      %s53 = sadd.s32 %s52, 1
      %p56 = scmp.eq.s32.totalorder %s18, 1
      %p57 = scmp.ne.s32.totalorder %s52, %s54
      %p58 = scmp.eq.s32.totalorder %s18, 0
      %p59 = por %p57, %p58
      %p60 = scmp.ne.s32.totalorder %s52, %s54
      %p61 = scmp.eq.s32.totalorder %s23, 1
      %p62 = por %p60, %p61
      %p63 = scmp.ne.s32.totalorder %s54, %s55
      %p64 = scmp.eq.s32.totalorder %s23, 0
      %p65 = por %p63, %p64
      %p66 = scmp.ne.s32.totalorder %s54, %s55
      %p67 = scmp.eq.s32.totalorder %s24, 1
      %p68 = por %p66, %p67
      %p70 = scmp.ne.s32.totalorder %s55, %s69
      %p71 = scmp.eq.s32.totalorder %s24, 0
      %p72 = por %p70, %p71
      %s74 = sadd.s32 %s73, 1
      %p77 = scmp.eq.s32.totalorder %s18, 1
      %p78 = scmp.ne.s32.totalorder %s73, %s75
      %p79 = scmp.eq.s32.totalorder %s18, 0
      %p80 = por %p78, %p79
      %p81 = scmp.ne.s32.totalorder %s73, %s75
      %p82 = scmp.eq.s32.totalorder %s23, 1
      %p83 = por %p81, %p82
      %p84 = scmp.ne.s32.totalorder %s75, %s76
      %p85 = scmp.eq.s32.totalorder %s23, 0
      %p86 = por %p84, %p85
      %p87 = scmp.ne.s32.totalorder %s75, %s76
      %p88 = scmp.eq.s32.totalorder %s24, 1
      %p89 = por %p87, %p88
      %p91 = scmp.ne.s32.totalorder %s76, %s90
      %p92 = scmp.eq.s32.totalorder %s24, 0
      %p93 = por %p91, %p92
      %s95 = sadd.s32 %s94, 1
      %p98 = scmp.eq.s32.totalorder %s18, 1
      %p99 = scmp.ne.s32.totalorder %s94, %s96
      %p100 = scmp.eq.s32.totalorder %s18, 0
      %p101 = por %p99, %p100
      %p102 = scmp.ne.s32.totalorder %s94, %s96
      %p103 = scmp.eq.s32.totalorder %s23, 1
      %p104 = por %p102, %p103
      %p105 = scmp.ne.s32.totalorder %s96, %s97
      %p106 = scmp.eq.s32.totalorder %s23, 0
      %p107 = por %p105, %p106
      %p108 = scmp.ne.s32.totalorder %s96, %s97
      %p109 = scmp.eq.s32.totalorder %s24, 1
      %p110 = por %p108, %p109
      %p112 = scmp.ne.s32.totalorder %s97, %s111
      %p113 = scmp.eq.s32.totalorder %s24, 0
      %p114 = por %p112, %p113
      %s116 = sadd.s32 %s115, 1
      %p119 = scmp.eq.s32.totalorder %s18, 1
      %p120 = scmp.ne.s32.totalorder %s115, %s117
      %p121 = scmp.eq.s32.totalorder %s18, 0
      %p122 = por %p120, %p121
      %p123 = scmp.ne.s32.totalorder %s115, %s117
      %p124 = scmp.eq.s32.totalorder %s23, 1
      %p125 = por %p123, %p124
      %p126 = scmp.ne.s32.totalorder %s117, %s118
      %p127 = scmp.eq.s32.totalorder %s23, 0
      %p128 = por %p126, %p127
      %p129 = scmp.ne.s32.totalorder %s117, %s118
      %p130 = scmp.eq.s32.totalorder %s24, 1
      %p131 = por %p129, %p130
      %p133 = scmp.ne.s32.totalorder %s118, %s132
      %p134 = scmp.eq.s32.totalorder %s24, 0
      %p135 = por %p133, %p134
      %s137 = sadd.s32 %s136, 1
      %p140 = scmp.eq.s32.totalorder %s18, 1
      %p141 = scmp.ne.s32.totalorder %s136, %s138
      %p142 = scmp.eq.s32.totalorder %s18, 0
      %p143 = por %p141, %p142
      %p144 = scmp.ne.s32.totalorder %s136, %s138
      %p145 = scmp.eq.s32.totalorder %s23, 1
      %p146 = por %p144, %p145
      %p147 = scmp.ne.s32.totalorder %s138, %s139
      %p148 = scmp.eq.s32.totalorder %s23, 0
      %p149 = por %p147, %p148
      %p150 = scmp.ne.s32.totalorder %s138, %s139
      %p151 = scmp.eq.s32.totalorder %s24, 1
      %p152 = por %p150, %p151
      %p154 = scmp.ne.s32.totalorder %s139, %s153
      %p155 = scmp.eq.s32.totalorder %s24, 0
      %p156 = por %p154, %p155
      %s157 = ssub.s32 %s18, %s25
      %p158 = scmp.eq.s32.totalorder %s157, 0
      %s160 = sadd.s32 %s159, 1
      %s161 = scalar_select %p158, %s159, %s160
      %p164 = pneg %p158
      %p165 = scmp.eq.s32.totalorder %s18, 1
      %p166 = por %p164, %p165
      %p167 = scmp.ne.s32.totalorder %s159, %s162
      %p168 = scmp.eq.s32.totalorder %s18, 0
      %p169 = por %p167, %p168
      %p170 = scmp.ne.s32.totalorder %s159, %s162
      %p171 = scmp.eq.s32.totalorder %s23, 1
      %p172 = por %p170, %p171
      %p173 = scmp.ne.s32.totalorder %s162, %s163
      %p174 = scmp.eq.s32.totalorder %s23, 0
      %p175 = por %p173, %p174
      %p176 = scmp.ne.s32.totalorder %s162, %s163
      %p177 = scmp.eq.s32.totalorder %s24, 1
      %p178 = por %p176, %p177
      %p180 = scmp.ne.s32.totalorder %s163, %s179
      %p181 = scmp.eq.s32.totalorder %s24, 0
      %p182 = por %p180, %p181
      %s183 = ssub.s32 %s18, %s25
      %p184 = scmp.eq.s32.totalorder %s183, 0
      %s186 = sadd.s32 %s185, 1
      %s187 = scalar_select %p184, %s185, %s186
      %p190 = pneg %p184
      %p191 = scmp.eq.s32.totalorder %s18, 1
      %p192 = por %p190, %p191
      %p193 = scmp.ne.s32.totalorder %s185, %s188
      %p194 = scmp.eq.s32.totalorder %s18, 0
      %p195 = por %p193, %p194
      %p196 = scmp.ne.s32.totalorder %s185, %s188
      %p197 = scmp.eq.s32.totalorder %s23, 1
      %p198 = por %p196, %p197
      %p199 = scmp.ne.s32.totalorder %s188, %s189
      %p200 = scmp.eq.s32.totalorder %s23, 0
      %p201 = por %p199, %p200
      %p202 = scmp.ne.s32.totalorder %s188, %s189
      %p203 = scmp.eq.s32.totalorder %s24, 1
      %p204 = por %p202, %p203
      %p206 = scmp.ne.s32.totalorder %s189, %s205
      %p207 = scmp.eq.s32.totalorder %s24, 0
      %p208 = por %p206, %p207
      %s209 = ssub.s32 %s18, %s25
      %p210 = scmp.eq.s32.totalorder %s209, 0
      %s212 = sadd.s32 %s211, 1
      %s213 = scalar_select %p210, %s211, %s212
      %p216 = pneg %p210
      %p217 = scmp.eq.s32.totalorder %s18, 1
      %p218 = por %p216, %p217
      %p219 = scmp.ne.s32.totalorder %s211, %s214
      %p220 = scmp.eq.s32.totalorder %s18, 0
      %p221 = por %p219, %p220
      %p222 = scmp.ne.s32.totalorder %s211, %s214
      %p223 = scmp.eq.s32.totalorder %s23, 1
      %p224 = por %p222, %p223
      %p225 = scmp.ne.s32.totalorder %s214, %s215
      %p226 = scmp.eq.s32.totalorder %s23, 0
      %p227 = por %p225, %p226
      %p228 = scmp.ne.s32.totalorder %s214, %s215
      %p229 = scmp.eq.s32.totalorder %s24, 1
      %p230 = por %p228, %p229
      %p232 = scmp.ne.s32.totalorder %s215, %s231
      %p233 = scmp.eq.s32.totalorder %s24, 0
      %p234 = por %p232, %p233
      %p235 = scmp.le.s32.totalorder 1, %s18
      %p236 = scmp.lt.s32.totalorder %s18, 3
      %p237 = pnand %p235, %p236
      %p238 = pneg %p237
      // Predicated region
      $region9: #{tpu_custom_call.1} parent=5 // pred_check
        _
      $region10: #{tpu_custom_call.1} parent=5 // pred_check_branch
        %240 = sbr.rel (%p237) target = $region12
      $region11: #{tpu_custom_call.1} parent=5 // pred_region
        %s241 = ssub.s32 %s18, 1
        // Predicated region
        $region13: #{tpu_custom_call.1} parent=11 // pred_check
          %p242 = pneg %p65
        $region14: #{tpu_custom_call.1} parent=11 // pred_check_branch
          %244 = sbr.rel (%p242) target = $region16
        $region15: #{tpu_custom_call.1} parent=11 // pred_region
          _
        $region16: #{tpu_custom_call.1} parent=11 // pred_fallthru
          _
        // Predicated region
        $region17: #{tpu_custom_call.1} parent=11 // pred_check
          %p245 = pneg %p86
        $region18: #{tpu_custom_call.1} parent=11 // pred_check_branch
          %247 = sbr.rel (%p245) target = $region20
        $region19: #{tpu_custom_call.1} parent=11 // pred_region
          _
        $region20: #{tpu_custom_call.1} parent=11 // pred_fallthru
          _
        // Predicated region
        $region21: #{tpu_custom_call.1} parent=11 // pred_check
          %p248 = pneg %p107
        $region22: #{tpu_custom_call.1} parent=11 // pred_check_branch
          %250 = sbr.rel (%p248) target = $region24
        $region23: #{tpu_custom_call.1} parent=11 // pred_region
          _
        $region24: #{tpu_custom_call.1} parent=11 // pred_fallthru
          _
        // Predicated region
        $region25: #{tpu_custom_call.1} parent=11 // pred_check
          %p251 = pneg %p128
        $region26: #{tpu_custom_call.1} parent=11 // pred_check_branch
          %253 = sbr.rel (%p251) target = $region28
        $region27: #{tpu_custom_call.1} parent=11 // pred_region
          _
        $region28: #{tpu_custom_call.1} parent=11 // pred_fallthru
          _
        // Predicated region
        $region29: #{tpu_custom_call.1} parent=11 // pred_check
          %p254 = pneg %p149
        $region30: #{tpu_custom_call.1} parent=11 // pred_check_branch
          %256 = sbr.rel (%p254) target = $region32
        $region31: #{tpu_custom_call.1} parent=11 // pred_region
          _
        $region32: #{tpu_custom_call.1} parent=11 // pred_fallthru
          _
      $region12: #{tpu_custom_call.1} parent=5 // pred_fallthru
        _
      %p257 = scmp.lt.s32.totalorder %s18, 2
      // Predicated region
      $region33: #{tpu_custom_call.1} parent=5 // pred_check
        %p258 = pneg %p257
      $region34: #{tpu_custom_call.1} parent=5 // pred_check_branch
        %260 = sbr.rel (%p258) target = $region36
      $region35: #{tpu_custom_call.1} parent=5 // pred_region
        // Predicated region
        $region37: #{tpu_custom_call.1} parent=35 // pred_check
          %p261 = pneg %p38
        $region38: #{tpu_custom_call.1} parent=35 // pred_check_branch
          %263 = sbr.rel (%p261) target = $region40
        $region39: #{tpu_custom_call.1} parent=35 // pred_region
          %s264 = smul.u32 8, %s18
          %p265 = scmp.lt.s32.totalorder %s264, 15
          %s266 = scalar_select %p265, %s264, 15
          %s267 = smul.addr %s266, 8
          %s268 = scalar_lea.vmem %s0, %s267
          %s269 = smul.u32 8, %s18
        $region40: #{tpu_custom_call.1} parent=35 // pred_fallthru
          _
        // Predicated region
        $region41: #{tpu_custom_call.1} parent=35 // pred_check
          %p270 = pneg %p169
        $region42: #{tpu_custom_call.1} parent=35 // pred_check_branch
          %272 = sbr.rel (%p270) target = $region44
        $region43: #{tpu_custom_call.1} parent=35 // pred_region
          %s273 = smul.u32 8, %s18
          %p274 = scmp.lt.s32.totalorder %s273, 15
          %s275 = scalar_select %p274, %s273, 15
          %s276 = smul.addr %s275, 8
          %s277 = scalar_lea.vmem %s6, %s276
          %s278 = smul.u32 8, %s18
        $region44: #{tpu_custom_call.1} parent=35 // pred_fallthru
          _
      $region36: #{tpu_custom_call.1} parent=5 // pred_fallthru
        _
      %p279 = scmp.le.s32.totalorder 1, %s18
      %p280 = scmp.lt.s32.totalorder %s18, 3
      %p281 = pnand %p279, %p280
      %p282 = pneg %p281
      // Predicated region
      $region45: #{tpu_custom_call.1} parent=5 // pred_check
        _
      $region46: #{tpu_custom_call.1} parent=5 // pred_check_branch
        %284 = sbr.rel (%p281) target = $region48
      $region47: #{tpu_custom_call.1} parent=5 // pred_region
        %s285 = ssub.s32 %s18, 1
        %s286 = smul.u32 8, %s23
        %p287 = scmp.lt.s32.totalorder %s286, 15
        %s288 = scalar_select %p287, %s286, 15
        %s289 = smul.addr %s288, 8
        %s290 = scalar_lea.vmem %s0, %s289
        %p291 = pneg %p44
        %p292 = pneg %p41
        %p293 = pneg %p65
        %p294 = pneg %p62
        %p295 = pneg %p86
        %p296 = pneg %p83
        %p297 = pneg %p107
        %p298 = pneg %p104
        %p299 = pneg %p128
        %p300 = pneg %p125
        %p301 = pneg %p149
        %p302 = pneg %p146
        %s303 = smul.u32 8, %s23
        %p304 = scmp.lt.s32.totalorder %s303, 15
        %s305 = scalar_select %p304, %s303, 15
        %s306 = smul.addr %s305, 8
        %s307 = scalar_lea.vmem %s6, %s306
        %p308 = pneg %p175
        %p309 = pneg %p172
        %p310 = pneg %p201
        %p311 = pneg %p198
        %s312 = smul.u32 8, %s23
        %p313 = scmp.lt.s32.totalorder %s312, 15
        %s314 = scalar_select %p313, %s312, 15
        %s315 = smul.addr %s314, 8
        %s316 = scalar_lea.vmem %s7, %s315
        %p317 = pneg %p227
        %p318 = pneg %p224
        %s319 = sand.u32 %s214, 1
        %s320 = scalar_lea.sflag [#allocation4], %s319
        %s321 = sand.u32 %s214, 1
        %s322 = smul.addr %s321, 64
        %s323 = scalar_lea.vmem [#allocation3], %s322
        %s324 = smul.u32 8, %s23
        %p325 = scmp.lt.s32.totalorder %s324, 15
        %s326 = scalar_select %p325, %s324, 15
        %s327 = smul.addr %s326, 8
        %s328 = scalar_lea.vmem %s0, %s327
        %s329 = smul.u32 8, %s23
        %s330 = smul.u32 8, %s23
        %p331 = scmp.lt.s32.totalorder %s330, 15
        %s332 = scalar_select %p331, %s330, 15
        %s333 = smul.addr %s332, 8
        %s334 = scalar_lea.vmem %s6, %s333
        %s335 = smul.u32 8, %s23
        %s336 = smul.u32 8, %s23
        %p337 = scmp.lt.s32.totalorder %s336, 15
        %s338 = scalar_select %p337, %s336, 15
        %s339 = smul.addr %s338, 8
        %s340 = scalar_lea.vmem %s7, %s339
        %s341 = smul.u32 8, %s23
        %s342 = smul.u32 8, %s23
        %v343 = vld [vmem:[%s328] sm:$0xff]
        %v344 = vld [vmem:[%s328 + $0x8] sm:$0xff]
        %v345 = vld [vmem:[%s328 + $0x10] sm:$0xff]
        %v346 = vld [vmem:[%s328 + $0x18] sm:$0xff]
        %v347 = vld [vmem:[%s328 + $0x20] sm:$0xff]
        %v348 = vld [vmem:[%s328 + $0x28] sm:$0xff]
        %v349 = vld [vmem:[%s328 + $0x30] sm:$0xff]
        %v350 = vld [vmem:[%s328 + $0x38] sm:$0xff]
        %v351 = vld [vmem:[%s1] sm:$0xff]
        %v352 = vld [vmem:[%s1 + $0x8] sm:$0xff]
        %v353 = vld [vmem:[%s3] sm:$0x1]
        %v355 = vlaneseq
        %v356 = vshrl.u32 %v355, 7
        %v357 = vsub.s32 0, %v356
        %v358 = vrot.slane %v353, %v357
        %vm360 = vcmask 130048
        %v362 = vsel %vm360, %v343, 0
        %v365 = vsel %vm360, %v344, 0
        %v368 = vsel %vm360, %v345, 0
        %v371 = vsel %vm360, %v346, 0
        %v374 = vsel %vm360, %v347, 0
        %v377 = vsel %vm360, %v348, 0
        %v380 = vsel %vm360, %v349, 0
        %v383 = vsel %vm360, %v350, 0
        %385 = vmatprep.subr.mxu0 0.0
        %386 = vmatpush1.msra.mxu0 %v351
        %387 = vmatprep.subr.mxu0 0.0
        %388 = vmatpush1.msra.mxu0 %v352
        %389 = vmatprep.subr.mxu0 0.0
        %390 = vmatpush1.msra.mxu0 0.0
        %391 = vmatprep.subr.mxu0 0.0
        %392 = vmatpush1.msra.mxu0 0.0
        %393 = vmatprep.subr.mxu0 0.0
        %394 = vmatpush1.msra.mxu0 0.0
        %395 = vmatprep.subr.mxu0 0.0
        %396 = vmatpush1.msra.mxu0 0.0
        %397 = vmatprep.subr.mxu0 0.0
        %398 = vmatpush1.msra.mxu0 0.0
        %399 = vmatprep.subr.mxu0 0.0
        %400 = vmatpush1.msra.mxu0 0.0
        %401 = vmatprep.subr.mxu0 0.0
        %402 = vmatpush1.msra.mxu0 0.0
        %403 = vmatprep.subr.mxu0 0.0
        %404 = vmatpush1.msra.mxu0 0.0
        %405 = vmatprep.subr.mxu0 0.0
        %406 = vmatpush1.msra.mxu0 0.0
        %407 = vmatprep.subr.mxu0 0.0
        %408 = vmatpush1.msra.mxu0 0.0
        %409 = vmatprep.subr.mxu0 0.0
        %410 = vmatpush1.msra.mxu0 0.0
        %411 = vmatprep.subr.mxu0 0.0
        %412 = vmatpush1.msra.mxu0 0.0
        %413 = vmatprep.subr.mxu0 0.0
        %414 = vmatpush1.msra.mxu0 0.0
        %415 = vmatprep.subr.mxu0 0.0
        %416 = vmatpush1.msra.mxu0 0.0
        %417 = vmatprep.subr.mxu0 0.0
        %418 = vmatpush1.msra.mxu0 0.0
        %419 = vmatprep.subr.mxu0 0.0
        %420 = vmatpush1.msra.mxu0 0.0
        %421 = vmatprep.subr.mxu0 0.0
        %422 = vmatpush1.msra.mxu0 0.0
        %423 = vmatprep.subr.mxu0 0.0
        %424 = vmatpush1.msra.mxu0 0.0
        %425 = vmatprep.subr.mxu0 0.0
        %426 = vmatpush1.msra.mxu0 0.0
        %427 = vmatprep.subr.mxu0 0.0
        %428 = vmatpush1.msra.mxu0 0.0
        %429 = vmatprep.subr.mxu0 0.0
        %430 = vmatpush1.msra.mxu0 0.0
        %431 = vmatprep.subr.mxu0 0.0
        %432 = vmatpush1.msra.mxu0 0.0
        %433 = vmatprep.subr.mxu0 0.0
        %434 = vmatpush1.msra.mxu0 0.0
        %435 = vmatprep.subr.mxu0 0.0
        %436 = vmatpush1.msra.mxu0 0.0
        %437 = vmatprep.subr.mxu0 0.0
        %438 = vmatpush1.msra.mxu0 0.0
        %439 = vmatprep.subr.mxu0 0.0
        %440 = vmatpush1.msra.mxu0 0.0
        %441 = vmatprep.subr.mxu0 0.0
        %442 = vmatpush1.msra.mxu0 0.0
        %443 = vmatprep.subr.mxu0 0.0
        %444 = vmatpush1.msra.mxu0 0.0
        %445 = vmatprep.subr.mxu0 0.0
        %446 = vmatpush1.msra.mxu0 0.0
        %447 = vmatprep.subr.mxu0 0.0
        %448 = vmatpush1.msra.mxu0 0.0
        %449 = vmatprep.mubr.f32.mxu0 0.0
        %450 = vmatmul.mubr.f32.gmra.mrb[0].mxu0 %v362
        %v451 = vpop.f32.mrb[0].mxu0
        %v452 = vadd.f32 %v358, %v451
        %v453 = vpop.f32.mrb[0].mxu0
        %454 = vmatprep.mubr.f32.mxu0 0.0
        %455 = vmatmul.mubr.f32.gmra.mrb[0].mxu0 %v365
        %v456 = vpop.f32.mrb[0].mxu0
        %v457 = vadd.f32 %v358, %v456
        %v458 = vpop.f32.mrb[0].mxu0
        %459 = vmatprep.mubr.f32.mxu0 0.0
        %460 = vmatmul.mubr.f32.gmra.mrb[0].mxu0 %v368
        %v461 = vpop.f32.mrb[0].mxu0
        %v462 = vadd.f32 %v358, %v461
        %v463 = vpop.f32.mrb[0].mxu0
        %464 = vmatprep.mubr.f32.mxu0 0.0
        %465 = vmatmul.mubr.f32.gmra.mrb[0].mxu0 %v371
        %v466 = vpop.f32.mrb[0].mxu0
        %v467 = vadd.f32 %v358, %v466
        %v468 = vpop.f32.mrb[0].mxu0
        %469 = vmatprep.mubr.f32.mxu0 0.0
        %470 = vmatmul.mubr.f32.gmra.mrb[0].mxu0 %v374
        %v471 = vpop.f32.mrb[0].mxu0
        %v472 = vadd.f32 %v358, %v471
        %v473 = vpop.f32.mrb[0].mxu0
        %474 = vmatprep.mubr.f32.mxu0 0.0
        %475 = vmatmul.mubr.f32.gmra.mrb[0].mxu0 %v377
        %v476 = vpop.f32.mrb[0].mxu0
        %v477 = vadd.f32 %v358, %v476
        %v478 = vpop.f32.mrb[0].mxu0
        %479 = vmatprep.mubr.f32.mxu0 0.0
        %480 = vmatmul.mubr.f32.gmra.mrb[0].mxu0 %v380
        %v481 = vpop.f32.mrb[0].mxu0
        %v482 = vadd.f32 %v358, %v481
        %v483 = vpop.f32.mrb[0].mxu0
        %484 = vmatprep.mubr.f32.mxu0 0.0
        %485 = vmatmul.mubr.f32.gmra.mrb[0].mxu0 %v383
        %v486 = vpop.f32.mrb[0].mxu0
        %v487 = vadd.f32 %v358, %v486
        %v488 = vpop.f32.mrb[0].mxu0
        %489 = vdwg.mxu0
        %490 = vst [vmem:[#allocation2] sm:$0xff] %v452
        %491 = vst [vmem:[#allocation2 + $0x8] sm:$0xff] %v457
        %492 = vst [vmem:[#allocation2 + $0x10] sm:$0xff] %v462
        %493 = vst [vmem:[#allocation2 + $0x18] sm:$0xff] %v467
        %494 = vst [vmem:[#allocation2 + $0x20] sm:$0xff] %v472
        %495 = vst [vmem:[#allocation2 + $0x28] sm:$0xff] %v477
        %496 = vst [vmem:[#allocation2 + $0x30] sm:$0xff] %v482
        %497 = vst [vmem:[#allocation2 + $0x38] sm:$0xff] %v487
        %v498 = vld [vmem:[%s2] sm:$0xff]
        %v499 = vld [vmem:[%s2 + $0x8] sm:$0xff]
        %v500 = vld [vmem:[%s2 + $0x10] sm:$0xff]
        %v501 = vld [vmem:[%s2 + $0x18] sm:$0xff]
        %v502 = vld [vmem:[#allocation2] sm:$0xff]
        %vm503 = vcmask 261120
        %v505 = vsel %vm503, 0.0, 0
        %507 = vmatprep.subr.mxu0 0.0
        %508 = vmatpush1.msra.mxu0 %v498
        %509 = vmatprep.subr.mxu0 0.0
        %510 = vmatpush1.msra.mxu0 %v499
        %511 = vmatprep.subr.mxu0 0.0
        %512 = vmatpush1.msra.mxu0 %v500
        %513 = vmatprep.subr.mxu0 0.0
        %514 = vmatpush1.msra.mxu0 %v501
        %515 = vmatprep.subr.mxu0 0.0
        %516 = vmatpush1.msra.mxu0 0.0
        %517 = vmatprep.subr.mxu0 0.0
        %518 = vmatpush1.msra.mxu0 0.0
        %519 = vmatprep.subr.mxu0 0.0
        %520 = vmatpush1.msra.mxu0 0.0
        %521 = vmatprep.subr.mxu0 0.0
        %522 = vmatpush1.msra.mxu0 0.0
        %523 = vmatprep.subr.mxu0 0.0
        %524 = vmatpush1.msra.mxu0 0.0
        %525 = vmatprep.subr.mxu0 0.0
        %526 = vmatpush1.msra.mxu0 0.0
        %527 = vmatprep.subr.mxu0 0.0
        %528 = vmatpush1.msra.mxu0 0.0
        %529 = vmatprep.subr.mxu0 0.0
        %530 = vmatpush1.msra.mxu0 0.0
        %531 = vmatprep.subr.mxu0 0.0
        %532 = vmatpush1.msra.mxu0 0.0
        %533 = vmatprep.subr.mxu0 0.0
        %534 = vmatpush1.msra.mxu0 0.0
        %535 = vmatprep.subr.mxu0 0.0
        %536 = vmatpush1.msra.mxu0 0.0
        %537 = vmatprep.subr.mxu0 0.0
        %538 = vmatpush1.msra.mxu0 0.0
        %539 = vmatprep.subr.mxu0 0.0
        %540 = vmatpush1.msra.mxu0 0.0
        %541 = vmatprep.subr.mxu0 0.0
        %542 = vmatpush1.msra.mxu0 0.0
        %543 = vmatprep.subr.mxu0 0.0
        %544 = vmatpush1.msra.mxu0 0.0
        %545 = vmatprep.subr.mxu0 0.0
        %546 = vmatpush1.msra.mxu0 0.0
        %547 = vmatprep.subr.mxu0 0.0
        %548 = vmatpush1.msra.mxu0 0.0
        %549 = vmatprep.subr.mxu0 0.0
        %550 = vmatpush1.msra.mxu0 0.0
        %551 = vmatprep.subr.mxu0 0.0
        %552 = vmatpush1.msra.mxu0 0.0
        %553 = vmatprep.subr.mxu0 0.0
        %554 = vmatpush1.msra.mxu0 0.0
        %555 = vmatprep.subr.mxu0 0.0
        %556 = vmatpush1.msra.mxu0 0.0
        %557 = vmatprep.subr.mxu0 0.0
        %558 = vmatpush1.msra.mxu0 0.0
        %559 = vmatprep.subr.mxu0 0.0
        %560 = vmatpush1.msra.mxu0 0.0
        %561 = vmatprep.subr.mxu0 0.0
        %562 = vmatpush1.msra.mxu0 0.0
        %563 = vmatprep.subr.mxu0 0.0
        %564 = vmatpush1.msra.mxu0 0.0
        %565 = vmatprep.subr.mxu0 0.0
        %566 = vmatpush1.msra.mxu0 0.0
        %567 = vmatprep.subr.mxu0 0.0
        %568 = vmatpush1.msra.mxu0 0.0
        %569 = vmatprep.subr.mxu0 0.0
        %570 = vmatpush1.msra.mxu0 0.0
        %571 = vmatprep.mubr.f32.mxu0 0.0
        %572 = vmatmul.mubr.f32.gmra.mrb[0].mxu0 %v505
        %v573 = vpop.f32.mrb[0].mxu0
        %v574 = vadd.f32 0.0, %v573
        %v575 = vpop.f32.mrb[0].mxu0
        %576 = vdwg.mxu0
        %v577 = vadd.f32 %v502, %v574
        %v578 = vxor.u32 %v577, 2147483648
        %v579 = vmul.f32 %v578, 1.442695
        %v580 = vpow.pop %v579
        %v581 = vadd.f32 %v580, 1.0
        %v582 = vrcp.pop %v581
        %v583 = vmul.f32 1.0, %v582
        %v584 = vtanh.pop %v577
        %v585 = vmul.f32 %v583, 0.0
        %587 = vrot.lane.b32.xlu0 %v584, 32
        %v588 = vpop.permute.xlu0 %587
        %v590 = vmul.f32 %v583, %v588
        %592 = vrot.lane.b32.xlu0 %v590, 32
        %v593 = vpop.permute.xlu0 %592
        %v595 = vadd.f32 %v585, %v593
        %v596 = vtanh.pop %v595
        %598 = vrot.lane.b32.xlu0 %v596, 32
        %v599 = vpop.permute.xlu0 %598
        %v601 = vmul.f32 %v583, %v599
        %603 = vrot.lane.b32.xlu0 %v601, 64
        %v604 = vpop.permute.xlu0 %603
        %606 = vst.msk [vmem:[%s340] sm:$0xff] %vm503, %v604
        %v607 = vld [vmem:[#allocation2 + $0x8] sm:$0xff]
        %v608 = vsel %vm503, %v604, 0
        %610 = vmatprep.subr.mxu0 0.0
        %611 = vmatpush1.msra.mxu0 %v498
        %612 = vmatprep.subr.mxu0 0.0
        %613 = vmatpush1.msra.mxu0 %v499
        %614 = vmatprep.subr.mxu0 0.0
        %615 = vmatpush1.msra.mxu0 %v500
        %616 = vmatprep.subr.mxu0 0.0
        %617 = vmatpush1.msra.mxu0 %v501
        %618 = vmatprep.subr.mxu0 0.0
        %619 = vmatpush1.msra.mxu0 0.0
        %620 = vmatprep.subr.mxu0 0.0
        %621 = vmatpush1.msra.mxu0 0.0
        %622 = vmatprep.subr.mxu0 0.0
        %623 = vmatpush1.msra.mxu0 0.0
        %624 = vmatprep.subr.mxu0 0.0
        %625 = vmatpush1.msra.mxu0 0.0
        %626 = vmatprep.subr.mxu0 0.0
        %627 = vmatpush1.msra.mxu0 0.0
        %628 = vmatprep.subr.mxu0 0.0
        %629 = vmatpush1.msra.mxu0 0.0
        %630 = vmatprep.subr.mxu0 0.0
        %631 = vmatpush1.msra.mxu0 0.0
        %632 = vmatprep.subr.mxu0 0.0
        %633 = vmatpush1.msra.mxu0 0.0
        %634 = vmatprep.subr.mxu0 0.0
        %635 = vmatpush1.msra.mxu0 0.0
        %636 = vmatprep.subr.mxu0 0.0
        %637 = vmatpush1.msra.mxu0 0.0
        %638 = vmatprep.subr.mxu0 0.0
        %639 = vmatpush1.msra.mxu0 0.0
        %640 = vmatprep.subr.mxu0 0.0
        %641 = vmatpush1.msra.mxu0 0.0
        %642 = vmatprep.subr.mxu0 0.0
        %643 = vmatpush1.msra.mxu0 0.0
        %644 = vmatprep.subr.mxu0 0.0
        %645 = vmatpush1.msra.mxu0 0.0
        %646 = vmatprep.subr.mxu0 0.0
        %647 = vmatpush1.msra.mxu0 0.0
        %648 = vmatprep.subr.mxu0 0.0
        %649 = vmatpush1.msra.mxu0 0.0
        %650 = vmatprep.subr.mxu0 0.0
        %651 = vmatpush1.msra.mxu0 0.0
        %652 = vmatprep.subr.mxu0 0.0
        %653 = vmatpush1.msra.mxu0 0.0
        %654 = vmatprep.subr.mxu0 0.0
        %655 = vmatpush1.msra.mxu0 0.0
        %656 = vmatprep.subr.mxu0 0.0
        %657 = vmatpush1.msra.mxu0 0.0
        %658 = vmatprep.subr.mxu0 0.0
        %659 = vmatpush1.msra.mxu0 0.0
        %660 = vmatprep.subr.mxu0 0.0
        %661 = vmatpush1.msra.mxu0 0.0
        %662 = vmatprep.subr.mxu0 0.0
        %663 = vmatpush1.msra.mxu0 0.0
        %664 = vmatprep.subr.mxu0 0.0
        %665 = vmatpush1.msra.mxu0 0.0
        %666 = vmatprep.subr.mxu0 0.0
        %667 = vmatpush1.msra.mxu0 0.0
        %668 = vmatprep.subr.mxu0 0.0
        %669 = vmatpush1.msra.mxu0 0.0
        %670 = vmatprep.subr.mxu0 0.0
        %671 = vmatpush1.msra.mxu0 0.0
        %672 = vmatprep.subr.mxu0 0.0
        %673 = vmatpush1.msra.mxu0 0.0
        %674 = vmatprep.mubr.f32.mxu0 0.0
        %675 = vmatmul.mubr.f32.gmra.mrb[0].mxu0 %v608
        %v676 = vpop.f32.mrb[0].mxu0
        %v677 = vadd.f32 0.0, %v676
        %v678 = vpop.f32.mrb[0].mxu0
        %679 = vdwg.mxu0
        %v680 = vadd.f32 %v607, %v677
        %v681 = vxor.u32 %v680, 2147483648
        %v682 = vmul.f32 %v681, 1.442695
        %v683 = vpow.pop %v682
        %v684 = vadd.f32 %v683, 1.0
        %v685 = vrcp.pop %v684
        %v686 = vmul.f32 1.0, %v685
        %v687 = vtanh.pop %v680
        %v688 = vmul.f32 %v686, %v595
        %690 = vrot.lane.b32.xlu0 %v687, 32
        %v691 = vpop.permute.xlu0 %690
        %v693 = vmul.f32 %v686, %v691
        %695 = vrot.lane.b32.xlu0 %v693, 32
        %v696 = vpop.permute.xlu0 %695
        %v698 = vadd.f32 %v688, %v696
        %v699 = vtanh.pop %v698
        %701 = vrot.lane.b32.xlu0 %v699, 32
        %v702 = vpop.permute.xlu0 %701
        %v704 = vmul.f32 %v686, %v702
        %706 = vrot.lane.b32.xlu0 %v704, 64
        %v707 = vpop.permute.xlu0 %706
        %709 = vst.msk [vmem:[%s340 + $0x8] sm:$0xff] %vm503, %v707
        %v710 = vld [vmem:[#allocation2 + $0x10] sm:$0xff]
        %v711 = vsel %vm503, %v707, 0
        %713 = vmatprep.subr.mxu0 0.0
        %714 = vmatpush1.msra.mxu0 %v498
        %715 = vmatprep.subr.mxu0 0.0
        %716 = vmatpush1.msra.mxu0 %v499
        %717 = vmatprep.subr.mxu0 0.0
        %718 = vmatpush1.msra.mxu0 %v500
        %719 = vmatprep.subr.mxu0 0.0
        %720 = vmatpush1.msra.mxu0 %v501
        %721 = vmatprep.subr.mxu0 0.0
        %722 = vmatpush1.msra.mxu0 0.0
        %723 = vmatprep.subr.mxu0 0.0
        %724 = vmatpush1.msra.mxu0 0.0
        %725 = vmatprep.subr.mxu0 0.0
        %726 = vmatpush1.msra.mxu0 0.0
        %727 = vmatprep.subr.mxu0 0.0
        %728 = vmatpush1.msra.mxu0 0.0
        %729 = vmatprep.subr.mxu0 0.0
        %730 = vmatpush1.msra.mxu0 0.0
        %731 = vmatprep.subr.mxu0 0.0
        %732 = vmatpush1.msra.mxu0 0.0
        %733 = vmatprep.subr.mxu0 0.0
        %734 = vmatpush1.msra.mxu0 0.0
        %735 = vmatprep.subr.mxu0 0.0
        %736 = vmatpush1.msra.mxu0 0.0
        %737 = vmatprep.subr.mxu0 0.0
        %738 = vmatpush1.msra.mxu0 0.0
        %739 = vmatprep.subr.mxu0 0.0
        %740 = vmatpush1.msra.mxu0 0.0
        %741 = vmatprep.subr.mxu0 0.0
        %742 = vmatpush1.msra.mxu0 0.0
        %743 = vmatprep.subr.mxu0 0.0
        %744 = vmatpush1.msra.mxu0 0.0
        %745 = vmatprep.subr.mxu0 0.0
        %746 = vmatpush1.msra.mxu0 0.0
        %747 = vmatprep.subr.mxu0 0.0
        %748 = vmatpush1.msra.mxu0 0.0
        %749 = vmatprep.subr.mxu0 0.0
        %750 = vmatpush1.msra.mxu0 0.0
        %751 = vmatprep.subr.mxu0 0.0
        %752 = vmatpush1.msra.mxu0 0.0
        %753 = vmatprep.subr.mxu0 0.0
        %754 = vmatpush1.msra.mxu0 0.0
        %755 = vmatprep.subr.mxu0 0.0
        %756 = vmatpush1.msra.mxu0 0.0
        %757 = vmatprep.subr.mxu0 0.0
        %758 = vmatpush1.msra.mxu0 0.0
        %759 = vmatprep.subr.mxu0 0.0
        %760 = vmatpush1.msra.mxu0 0.0
        %761 = vmatprep.subr.mxu0 0.0
        %762 = vmatpush1.msra.mxu0 0.0
        %763 = vmatprep.subr.mxu0 0.0
        %764 = vmatpush1.msra.mxu0 0.0
        %765 = vmatprep.subr.mxu0 0.0
        %766 = vmatpush1.msra.mxu0 0.0
        %767 = vmatprep.subr.mxu0 0.0
        %768 = vmatpush1.msra.mxu0 0.0
        %769 = vmatprep.subr.mxu0 0.0
        %770 = vmatpush1.msra.mxu0 0.0
        %771 = vmatprep.subr.mxu0 0.0
        %772 = vmatpush1.msra.mxu0 0.0
        %773 = vmatprep.subr.mxu0 0.0
        %774 = vmatpush1.msra.mxu0 0.0
        %775 = vmatprep.subr.mxu0 0.0
        %776 = vmatpush1.msra.mxu0 0.0
        %777 = vmatprep.mubr.f32.mxu0 0.0
        %778 = vmatmul.mubr.f32.gmra.mrb[0].mxu0 %v711
        %v779 = vpop.f32.mrb[0].mxu0
        %v780 = vadd.f32 0.0, %v779
        %v781 = vpop.f32.mrb[0].mxu0
        %782 = vdwg.mxu0
        %v783 = vadd.f32 %v710, %v780
        %v784 = vxor.u32 %v783, 2147483648
        %v785 = vmul.f32 %v784, 1.442695
        %v786 = vpow.pop %v785
        %v787 = vadd.f32 %v786, 1.0
        %v788 = vrcp.pop %v787
        %v789 = vmul.f32 1.0, %v788
        %v790 = vtanh.pop %v783
        %v791 = vmul.f32 %v789, %v698
        %793 = vrot.lane.b32.xlu0 %v790, 32
        %v794 = vpop.permute.xlu0 %793
        %v796 = vmul.f32 %v789, %v794
        %798 = vrot.lane.b32.xlu0 %v796, 32
        %v799 = vpop.permute.xlu0 %798
        %v801 = vadd.f32 %v791, %v799
        %v802 = vtanh.pop %v801
        %804 = vrot.lane.b32.xlu0 %v802, 32
        %v805 = vpop.permute.xlu0 %804
        %v807 = vmul.f32 %v789, %v805
        %809 = vrot.lane.b32.xlu0 %v807, 64
        %v810 = vpop.permute.xlu0 %809
        %812 = vst.msk [vmem:[%s340 + $0x10] sm:$0xff] %vm503, %v810
        %v813 = vld [vmem:[#allocation2 + $0x18] sm:$0xff]
        %v814 = vsel %vm503, %v810, 0
        %816 = vmatprep.subr.mxu0 0.0
        %817 = vmatpush1.msra.mxu0 %v498
        %818 = vmatprep.subr.mxu0 0.0
        %819 = vmatpush1.msra.mxu0 %v499
        %820 = vmatprep.subr.mxu0 0.0
        %821 = vmatpush1.msra.mxu0 %v500
        %822 = vmatprep.subr.mxu0 0.0
        %823 = vmatpush1.msra.mxu0 %v501
        %824 = vmatprep.subr.mxu0 0.0
        %825 = vmatpush1.msra.mxu0 0.0
        %826 = vmatprep.subr.mxu0 0.0
        %827 = vmatpush1.msra.mxu0 0.0
        %828 = vmatprep.subr.mxu0 0.0
        %829 = vmatpush1.msra.mxu0 0.0
        %830 = vmatprep.subr.mxu0 0.0
        %831 = vmatpush1.msra.mxu0 0.0
        %832 = vmatprep.subr.mxu0 0.0
        %833 = vmatpush1.msra.mxu0 0.0
        %834 = vmatprep.subr.mxu0 0.0
        %835 = vmatpush1.msra.mxu0 0.0
        %836 = vmatprep.subr.mxu0 0.0
        %837 = vmatpush1.msra.mxu0 0.0
        %838 = vmatprep.subr.mxu0 0.0
        %839 = vmatpush1.msra.mxu0 0.0
        %840 = vmatprep.subr.mxu0 0.0
        %841 = vmatpush1.msra.mxu0 0.0
        %842 = vmatprep.subr.mxu0 0.0
        %843 = vmatpush1.msra.mxu0 0.0
        %844 = vmatprep.subr.mxu0 0.0
        %845 = vmatpush1.msra.mxu0 0.0
        %846 = vmatprep.subr.mxu0 0.0
        %847 = vmatpush1.msra.mxu0 0.0
        %848 = vmatprep.subr.mxu0 0.0
        %849 = vmatpush1.msra.mxu0 0.0
        %850 = vmatprep.subr.mxu0 0.0
        %851 = vmatpush1.msra.mxu0 0.0
        %852 = vmatprep.subr.mxu0 0.0
        %853 = vmatpush1.msra.mxu0 0.0
        %854 = vmatprep.subr.mxu0 0.0
        %855 = vmatpush1.msra.mxu0 0.0
        %856 = vmatprep.subr.mxu0 0.0
        %857 = vmatpush1.msra.mxu0 0.0
        %858 = vmatprep.subr.mxu0 0.0
        %859 = vmatpush1.msra.mxu0 0.0
        %860 = vmatprep.subr.mxu0 0.0
        %861 = vmatpush1.msra.mxu0 0.0
        %862 = vmatprep.subr.mxu0 0.0
        %863 = vmatpush1.msra.mxu0 0.0
        %864 = vmatprep.subr.mxu0 0.0
        %865 = vmatpush1.msra.mxu0 0.0
        %866 = vmatprep.subr.mxu0 0.0
        %867 = vmatpush1.msra.mxu0 0.0
        %868 = vmatprep.subr.mxu0 0.0
        %869 = vmatpush1.msra.mxu0 0.0
        %870 = vmatprep.subr.mxu0 0.0
        %871 = vmatpush1.msra.mxu0 0.0
        %872 = vmatprep.subr.mxu0 0.0
        %873 = vmatpush1.msra.mxu0 0.0
        %874 = vmatprep.subr.mxu0 0.0
        %875 = vmatpush1.msra.mxu0 0.0
        %876 = vmatprep.subr.mxu0 0.0
        %877 = vmatpush1.msra.mxu0 0.0
        %878 = vmatprep.subr.mxu0 0.0
        %879 = vmatpush1.msra.mxu0 0.0
        %880 = vmatprep.mubr.f32.mxu0 0.0
        %881 = vmatmul.mubr.f32.gmra.mrb[0].mxu0 %v814
        %v882 = vpop.f32.mrb[0].mxu0
        %v883 = vadd.f32 0.0, %v882
        %v884 = vpop.f32.mrb[0].mxu0
        %885 = vdwg.mxu0
        %v886 = vadd.f32 %v813, %v883
        %v887 = vxor.u32 %v886, 2147483648
        %v888 = vmul.f32 %v887, 1.442695
        %v889 = vpow.pop %v888
        %v890 = vadd.f32 %v889, 1.0
        %v891 = vrcp.pop %v890
        %v892 = vmul.f32 1.0, %v891
        %v893 = vtanh.pop %v886
        %v894 = vmul.f32 %v892, %v801
        %896 = vrot.lane.b32.xlu0 %v893, 32
        %v897 = vpop.permute.xlu0 %896
        %v899 = vmul.f32 %v892, %v897
        %901 = vrot.lane.b32.xlu0 %v899, 32
        %v902 = vpop.permute.xlu0 %901
        %v904 = vadd.f32 %v894, %v902
        %v905 = vtanh.pop %v904
        %907 = vrot.lane.b32.xlu0 %v905, 32
        %v908 = vpop.permute.xlu0 %907
        %v910 = vmul.f32 %v892, %v908
        %912 = vrot.lane.b32.xlu0 %v910, 64
        %v913 = vpop.permute.xlu0 %912
        %915 = vst.msk [vmem:[%s340 + $0x18] sm:$0xff] %vm503, %v913
        %v916 = vld [vmem:[#allocation2 + $0x20] sm:$0xff]
        %v917 = vsel %vm503, %v913, 0
        %919 = vmatprep.subr.mxu0 0.0
        %920 = vmatpush1.msra.mxu0 %v498
        %921 = vmatprep.subr.mxu0 0.0
        %922 = vmatpush1.msra.mxu0 %v499
        %923 = vmatprep.subr.mxu0 0.0
        %924 = vmatpush1.msra.mxu0 %v500
        %925 = vmatprep.subr.mxu0 0.0
        %926 = vmatpush1.msra.mxu0 %v501
        %927 = vmatprep.subr.mxu0 0.0
        %928 = vmatpush1.msra.mxu0 0.0
        %929 = vmatprep.subr.mxu0 0.0
        %930 = vmatpush1.msra.mxu0 0.0
        %931 = vmatprep.subr.mxu0 0.0
        %932 = vmatpush1.msra.mxu0 0.0
        %933 = vmatprep.subr.mxu0 0.0
        %934 = vmatpush1.msra.mxu0 0.0
        %935 = vmatprep.subr.mxu0 0.0
        %936 = vmatpush1.msra.mxu0 0.0
        %937 = vmatprep.subr.mxu0 0.0
        %938 = vmatpush1.msra.mxu0 0.0
        %939 = vmatprep.subr.mxu0 0.0
        %940 = vmatpush1.msra.mxu0 0.0
        %941 = vmatprep.subr.mxu0 0.0
        %942 = vmatpush1.msra.mxu0 0.0
        %943 = vmatprep.subr.mxu0 0.0
        %944 = vmatpush1.msra.mxu0 0.0
        %945 = vmatprep.subr.mxu0 0.0
        %946 = vmatpush1.msra.mxu0 0.0
        %947 = vmatprep.subr.mxu0 0.0
        %948 = vmatpush1.msra.mxu0 0.0
        %949 = vmatprep.subr.mxu0 0.0
        %950 = vmatpush1.msra.mxu0 0.0
        %951 = vmatprep.subr.mxu0 0.0
        %952 = vmatpush1.msra.mxu0 0.0
        %953 = vmatprep.subr.mxu0 0.0
        %954 = vmatpush1.msra.mxu0 0.0
        %955 = vmatprep.subr.mxu0 0.0
        %956 = vmatpush1.msra.mxu0 0.0
        %957 = vmatprep.subr.mxu0 0.0
        %958 = vmatpush1.msra.mxu0 0.0
        %959 = vmatprep.subr.mxu0 0.0
        %960 = vmatpush1.msra.mxu0 0.0
        %961 = vmatprep.subr.mxu0 0.0
        %962 = vmatpush1.msra.mxu0 0.0
        %963 = vmatprep.subr.mxu0 0.0
        %964 = vmatpush1.msra.mxu0 0.0
        %965 = vmatprep.subr.mxu0 0.0
        %966 = vmatpush1.msra.mxu0 0.0
        %967 = vmatprep.subr.mxu0 0.0
        %968 = vmatpush1.msra.mxu0 0.0
        %969 = vmatprep.subr.mxu0 0.0
        %970 = vmatpush1.msra.mxu0 0.0
        %971 = vmatprep.subr.mxu0 0.0
        %972 = vmatpush1.msra.mxu0 0.0
        %973 = vmatprep.subr.mxu0 0.0
        %974 = vmatpush1.msra.mxu0 0.0
        %975 = vmatprep.subr.mxu0 0.0
        %976 = vmatpush1.msra.mxu0 0.0
        %977 = vmatprep.subr.mxu0 0.0
        %978 = vmatpush1.msra.mxu0 0.0
        %979 = vmatprep.subr.mxu0 0.0
        %980 = vmatpush1.msra.mxu0 0.0
        %981 = vmatprep.subr.mxu0 0.0
        %982 = vmatpush1.msra.mxu0 0.0
        %983 = vmatprep.mubr.f32.mxu0 0.0
        %984 = vmatmul.mubr.f32.gmra.mrb[0].mxu0 %v917
        %v985 = vpop.f32.mrb[0].mxu0
        %v986 = vadd.f32 0.0, %v985
        %v987 = vpop.f32.mrb[0].mxu0
        %988 = vdwg.mxu0
        %v989 = vadd.f32 %v916, %v986
        %v990 = vxor.u32 %v989, 2147483648
        %v991 = vmul.f32 %v990, 1.442695
        %v992 = vpow.pop %v991
        %v993 = vadd.f32 %v992, 1.0
        %v994 = vrcp.pop %v993
        %v995 = vmul.f32 1.0, %v994
        %v996 = vtanh.pop %v989
        %v997 = vmul.f32 %v995, %v904
        %999 = vrot.lane.b32.xlu0 %v996, 32
        %v1000 = vpop.permute.xlu0 %999
        %v1002 = vmul.f32 %v995, %v1000
        %1004 = vrot.lane.b32.xlu0 %v1002, 32
        %v1005 = vpop.permute.xlu0 %1004
        %v1007 = vadd.f32 %v997, %v1005
        %v1008 = vtanh.pop %v1007
        %1010 = vrot.lane.b32.xlu0 %v1008, 32
        %v1011 = vpop.permute.xlu0 %1010
        %v1013 = vmul.f32 %v995, %v1011
        %1015 = vrot.lane.b32.xlu0 %v1013, 64
        %v1016 = vpop.permute.xlu0 %1015
        %1018 = vst.msk [vmem:[%s340 + $0x20] sm:$0xff] %vm503, %v1016
        %v1019 = vld [vmem:[#allocation2 + $0x28] sm:$0xff]
        %v1020 = vsel %vm503, %v1016, 0
        %1022 = vmatprep.subr.mxu0 0.0
        %1023 = vmatpush1.msra.mxu0 %v498
        %1024 = vmatprep.subr.mxu0 0.0
        %1025 = vmatpush1.msra.mxu0 %v499
        %1026 = vmatprep.subr.mxu0 0.0
        %1027 = vmatpush1.msra.mxu0 %v500
        %1028 = vmatprep.subr.mxu0 0.0
        %1029 = vmatpush1.msra.mxu0 %v501
        %1030 = vmatprep.subr.mxu0 0.0
        %1031 = vmatpush1.msra.mxu0 0.0
        %1032 = vmatprep.subr.mxu0 0.0
        %1033 = vmatpush1.msra.mxu0 0.0
        %1034 = vmatprep.subr.mxu0 0.0
        %1035 = vmatpush1.msra.mxu0 0.0
        %1036 = vmatprep.subr.mxu0 0.0
        %1037 = vmatpush1.msra.mxu0 0.0
        %1038 = vmatprep.subr.mxu0 0.0
        %1039 = vmatpush1.msra.mxu0 0.0
        %1040 = vmatprep.subr.mxu0 0.0
        %1041 = vmatpush1.msra.mxu0 0.0
        %1042 = vmatprep.subr.mxu0 0.0
        %1043 = vmatpush1.msra.mxu0 0.0
        %1044 = vmatprep.subr.mxu0 0.0
        %1045 = vmatpush1.msra.mxu0 0.0
        %1046 = vmatprep.subr.mxu0 0.0
        %1047 = vmatpush1.msra.mxu0 0.0
        %1048 = vmatprep.subr.mxu0 0.0
        %1049 = vmatpush1.msra.mxu0 0.0
        %1050 = vmatprep.subr.mxu0 0.0
        %1051 = vmatpush1.msra.mxu0 0.0
        %1052 = vmatprep.subr.mxu0 0.0
        %1053 = vmatpush1.msra.mxu0 0.0
        %1054 = vmatprep.subr.mxu0 0.0
        %1055 = vmatpush1.msra.mxu0 0.0
        %1056 = vmatprep.subr.mxu0 0.0
        %1057 = vmatpush1.msra.mxu0 0.0
        %1058 = vmatprep.subr.mxu0 0.0
        %1059 = vmatpush1.msra.mxu0 0.0
        %1060 = vmatprep.subr.mxu0 0.0
        %1061 = vmatpush1.msra.mxu0 0.0
        %1062 = vmatprep.subr.mxu0 0.0
        %1063 = vmatpush1.msra.mxu0 0.0
        %1064 = vmatprep.subr.mxu0 0.0
        %1065 = vmatpush1.msra.mxu0 0.0
        %1066 = vmatprep.subr.mxu0 0.0
        %1067 = vmatpush1.msra.mxu0 0.0
        %1068 = vmatprep.subr.mxu0 0.0
        %1069 = vmatpush1.msra.mxu0 0.0
        %1070 = vmatprep.subr.mxu0 0.0
        %1071 = vmatpush1.msra.mxu0 0.0
        %1072 = vmatprep.subr.mxu0 0.0
        %1073 = vmatpush1.msra.mxu0 0.0
        %1074 = vmatprep.subr.mxu0 0.0
        %1075 = vmatpush1.msra.mxu0 0.0
        %1076 = vmatprep.subr.mxu0 0.0
        %1077 = vmatpush1.msra.mxu0 0.0
        %1078 = vmatprep.subr.mxu0 0.0
        %1079 = vmatpush1.msra.mxu0 0.0
        %1080 = vmatprep.subr.mxu0 0.0
        %1081 = vmatpush1.msra.mxu0 0.0
        %1082 = vmatprep.subr.mxu0 0.0
        %1083 = vmatpush1.msra.mxu0 0.0
        %1084 = vmatprep.subr.mxu0 0.0
        %1085 = vmatpush1.msra.mxu0 0.0
        %1086 = vmatprep.mubr.f32.mxu0 0.0
        %1087 = vmatmul.mubr.f32.gmra.mrb[0].mxu0 %v1020
        %v1088 = vpop.f32.mrb[0].mxu0
        %v1089 = vadd.f32 0.0, %v1088
        %v1090 = vpop.f32.mrb[0].mxu0
        %1091 = vdwg.mxu0
        %v1092 = vadd.f32 %v1019, %v1089
        %v1093 = vxor.u32 %v1092, 2147483648
        %v1094 = vmul.f32 %v1093, 1.442695
        %v1095 = vpow.pop %v1094
        %v1096 = vadd.f32 %v1095, 1.0
        %v1097 = vrcp.pop %v1096
        %v1098 = vmul.f32 1.0, %v1097
        %v1099 = vtanh.pop %v1092
        %v1100 = vmul.f32 %v1098, %v1007
        %1102 = vrot.lane.b32.xlu0 %v1099, 32
        %v1103 = vpop.permute.xlu0 %1102
        %v1105 = vmul.f32 %v1098, %v1103
        %1107 = vrot.lane.b32.xlu0 %v1105, 32
        %v1108 = vpop.permute.xlu0 %1107
        %v1110 = vadd.f32 %v1100, %v1108
        %v1111 = vtanh.pop %v1110
        %1113 = vrot.lane.b32.xlu0 %v1111, 32
        %v1114 = vpop.permute.xlu0 %1113
        %v1116 = vmul.f32 %v1098, %v1114
        %1118 = vrot.lane.b32.xlu0 %v1116, 64
        %v1119 = vpop.permute.xlu0 %1118
        %1121 = vst.msk [vmem:[%s340 + $0x28] sm:$0xff] %vm503, %v1119
        %v1122 = vld [vmem:[#allocation2 + $0x30] sm:$0xff]
        %v1123 = vsel %vm503, %v1119, 0
        %1125 = vmatprep.subr.mxu0 0.0
        %1126 = vmatpush1.msra.mxu0 %v498
        %1127 = vmatprep.subr.mxu0 0.0
        %1128 = vmatpush1.msra.mxu0 %v499
        %1129 = vmatprep.subr.mxu0 0.0
        %1130 = vmatpush1.msra.mxu0 %v500
        %1131 = vmatprep.subr.mxu0 0.0
        %1132 = vmatpush1.msra.mxu0 %v501
        %1133 = vmatprep.subr.mxu0 0.0
        %1134 = vmatpush1.msra.mxu0 0.0
        %1135 = vmatprep.subr.mxu0 0.0
        %1136 = vmatpush1.msra.mxu0 0.0
        %1137 = vmatprep.subr.mxu0 0.0
        %1138 = vmatpush1.msra.mxu0 0.0
        %1139 = vmatprep.subr.mxu0 0.0
        %1140 = vmatpush1.msra.mxu0 0.0
        %1141 = vmatprep.subr.mxu0 0.0
        %1142 = vmatpush1.msra.mxu0 0.0
        %1143 = vmatprep.subr.mxu0 0.0
        %1144 = vmatpush1.msra.mxu0 0.0
        %1145 = vmatprep.subr.mxu0 0.0
        %1146 = vmatpush1.msra.mxu0 0.0
        %1147 = vmatprep.subr.mxu0 0.0
        %1148 = vmatpush1.msra.mxu0 0.0
        %1149 = vmatprep.subr.mxu0 0.0
        %1150 = vmatpush1.msra.mxu0 0.0
        %1151 = vmatprep.subr.mxu0 0.0
        %1152 = vmatpush1.msra.mxu0 0.0
        %1153 = vmatprep.subr.mxu0 0.0
        %1154 = vmatpush1.msra.mxu0 0.0
        %1155 = vmatprep.subr.mxu0 0.0
        %1156 = vmatpush1.msra.mxu0 0.0
        %1157 = vmatprep.subr.mxu0 0.0
        %1158 = vmatpush1.msra.mxu0 0.0
        %1159 = vmatprep.subr.mxu0 0.0
        %1160 = vmatpush1.msra.mxu0 0.0
        %1161 = vmatprep.subr.mxu0 0.0
        %1162 = vmatpush1.msra.mxu0 0.0
        %1163 = vmatprep.subr.mxu0 0.0
        %1164 = vmatpush1.msra.mxu0 0.0
        %1165 = vmatprep.subr.mxu0 0.0
        %1166 = vmatpush1.msra.mxu0 0.0
        %1167 = vmatprep.subr.mxu0 0.0
        %1168 = vmatpush1.msra.mxu0 0.0
        %1169 = vmatprep.subr.mxu0 0.0
        %1170 = vmatpush1.msra.mxu0 0.0
        %1171 = vmatprep.subr.mxu0 0.0
        %1172 = vmatpush1.msra.mxu0 0.0
        %1173 = vmatprep.subr.mxu0 0.0
        %1174 = vmatpush1.msra.mxu0 0.0
        %1175 = vmatprep.subr.mxu0 0.0
        %1176 = vmatpush1.msra.mxu0 0.0
        %1177 = vmatprep.subr.mxu0 0.0
        %1178 = vmatpush1.msra.mxu0 0.0
        %1179 = vmatprep.subr.mxu0 0.0
        %1180 = vmatpush1.msra.mxu0 0.0
        %1181 = vmatprep.subr.mxu0 0.0
        %1182 = vmatpush1.msra.mxu0 0.0
        %1183 = vmatprep.subr.mxu0 0.0
        %1184 = vmatpush1.msra.mxu0 0.0
        %1185 = vmatprep.subr.mxu0 0.0
        %1186 = vmatpush1.msra.mxu0 0.0
        %1187 = vmatprep.subr.mxu0 0.0
        %1188 = vmatpush1.msra.mxu0 0.0
        %1189 = vmatprep.mubr.f32.mxu0 0.0
        %1190 = vmatmul.mubr.f32.gmra.mrb[0].mxu0 %v1123
        %v1191 = vpop.f32.mrb[0].mxu0
        %v1192 = vadd.f32 0.0, %v1191
        %v1193 = vpop.f32.mrb[0].mxu0
        %1194 = vdwg.mxu0
        %v1195 = vadd.f32 %v1122, %v1192
        %v1196 = vxor.u32 %v1195, 2147483648
        %v1197 = vmul.f32 %v1196, 1.442695
        %v1198 = vpow.pop %v1197
        %v1199 = vadd.f32 %v1198, 1.0
        %v1200 = vrcp.pop %v1199
        %v1201 = vmul.f32 1.0, %v1200
        %v1202 = vtanh.pop %v1195
        %v1203 = vmul.f32 %v1201, %v1110
        %1205 = vrot.lane.b32.xlu0 %v1202, 32
        %v1206 = vpop.permute.xlu0 %1205
        %v1208 = vmul.f32 %v1201, %v1206
        %1210 = vrot.lane.b32.xlu0 %v1208, 32
        %v1211 = vpop.permute.xlu0 %1210
        %v1213 = vadd.f32 %v1203, %v1211
        %v1214 = vtanh.pop %v1213
        %1216 = vrot.lane.b32.xlu0 %v1214, 32
        %v1217 = vpop.permute.xlu0 %1216
        %v1219 = vmul.f32 %v1201, %v1217
        %1221 = vrot.lane.b32.xlu0 %v1219, 64
        %v1222 = vpop.permute.xlu0 %1221
        %1224 = vst.msk [vmem:[%s340 + $0x30] sm:$0xff] %vm503, %v1222
        %v1225 = vld [vmem:[#allocation2 + $0x38] sm:$0xff]
        %v1226 = vsel %vm503, %v1222, 0
        %1228 = vmatprep.subr.mxu0 0.0
        %1229 = vmatpush1.msra.mxu0 %v498
        %1230 = vmatprep.subr.mxu0 0.0
        %1231 = vmatpush1.msra.mxu0 %v499
        %1232 = vmatprep.subr.mxu0 0.0
        %1233 = vmatpush1.msra.mxu0 %v500
        %1234 = vmatprep.subr.mxu0 0.0
        %1235 = vmatpush1.msra.mxu0 %v501
        %1236 = vmatprep.subr.mxu0 0.0
        %1237 = vmatpush1.msra.mxu0 0.0
        %1238 = vmatprep.subr.mxu0 0.0
        %1239 = vmatpush1.msra.mxu0 0.0
        %1240 = vmatprep.subr.mxu0 0.0
        %1241 = vmatpush1.msra.mxu0 0.0
        %1242 = vmatprep.subr.mxu0 0.0
        %1243 = vmatpush1.msra.mxu0 0.0
        %1244 = vmatprep.subr.mxu0 0.0
        %1245 = vmatpush1.msra.mxu0 0.0
        %1246 = vmatprep.subr.mxu0 0.0
        %1247 = vmatpush1.msra.mxu0 0.0
        %1248 = vmatprep.subr.mxu0 0.0
        %1249 = vmatpush1.msra.mxu0 0.0
        %1250 = vmatprep.subr.mxu0 0.0
        %1251 = vmatpush1.msra.mxu0 0.0
        %1252 = vmatprep.subr.mxu0 0.0
        %1253 = vmatpush1.msra.mxu0 0.0
        %1254 = vmatprep.subr.mxu0 0.0
        %1255 = vmatpush1.msra.mxu0 0.0
        %1256 = vmatprep.subr.mxu0 0.0
        %1257 = vmatpush1.msra.mxu0 0.0
        %1258 = vmatprep.subr.mxu0 0.0
        %1259 = vmatpush1.msra.mxu0 0.0
        %1260 = vmatprep.subr.mxu0 0.0
        %1261 = vmatpush1.msra.mxu0 0.0
        %1262 = vmatprep.subr.mxu0 0.0
        %1263 = vmatpush1.msra.mxu0 0.0
        %1264 = vmatprep.subr.mxu0 0.0
        %1265 = vmatpush1.msra.mxu0 0.0
        %1266 = vmatprep.subr.mxu0 0.0
        %1267 = vmatpush1.msra.mxu0 0.0
        %1268 = vmatprep.subr.mxu0 0.0
        %1269 = vmatpush1.msra.mxu0 0.0
        %1270 = vmatprep.subr.mxu0 0.0
        %1271 = vmatpush1.msra.mxu0 0.0
        %1272 = vmatprep.subr.mxu0 0.0
        %1273 = vmatpush1.msra.mxu0 0.0
        %1274 = vmatprep.subr.mxu0 0.0
        %1275 = vmatpush1.msra.mxu0 0.0
        %1276 = vmatprep.subr.mxu0 0.0
        %1277 = vmatpush1.msra.mxu0 0.0
        %1278 = vmatprep.subr.mxu0 0.0
        %1279 = vmatpush1.msra.mxu0 0.0
        %1280 = vmatprep.subr.mxu0 0.0
        %1281 = vmatpush1.msra.mxu0 0.0
        %1282 = vmatprep.subr.mxu0 0.0
        %1283 = vmatpush1.msra.mxu0 0.0
        %1284 = vmatprep.subr.mxu0 0.0
        %1285 = vmatpush1.msra.mxu0 0.0
        %1286 = vmatprep.subr.mxu0 0.0
        %1287 = vmatpush1.msra.mxu0 0.0
        %1288 = vmatprep.subr.mxu0 0.0
        %1289 = vmatpush1.msra.mxu0 0.0
        %1290 = vmatprep.subr.mxu0 0.0
        %1291 = vmatpush1.msra.mxu0 0.0
        %1292 = vmatprep.mubr.f32.mxu0 0.0
        %1293 = vmatmul.mubr.f32.gmra.mrb[0].mxu0 %v1226
        %v1294 = vpop.f32.mrb[0].mxu0
        %v1295 = vadd.f32 0.0, %v1294
        %v1296 = vpop.f32.mrb[0].mxu0
        %1297 = vdwg.mxu0
        %v1298 = vadd.f32 %v1225, %v1295
        %v1299 = vxor.u32 %v1298, 2147483648
        %v1300 = vmul.f32 %v1299, 1.442695
        %v1301 = vpow.pop %v1300
        %v1302 = vadd.f32 %v1301, 1.0
        %v1303 = vrcp.pop %v1302
        %v1304 = vmul.f32 1.0, %v1303
        %v1305 = vtanh.pop %v1298
        %v1306 = vmul.f32 %v1304, %v1213
        %1308 = vrot.lane.b32.xlu0 %v1305, 32
        %v1309 = vpop.permute.xlu0 %1308
        %v1311 = vmul.f32 %v1304, %v1309
        %1313 = vrot.lane.b32.xlu0 %v1311, 32
        %v1314 = vpop.permute.xlu0 %1313
        %v1316 = vadd.f32 %v1306, %v1314
        %v1317 = vtanh.pop %v1316
        %1319 = vrot.lane.b32.xlu0 %v1317, 32
        %v1320 = vpop.permute.xlu0 %1319
        %v1322 = vmul.f32 %v1304, %v1320
        %1324 = vrot.lane.b32.xlu0 %v1322, 64
        %v1325 = vpop.permute.xlu0 %1324
        %1327 = vst.msk [vmem:[%s340 + $0x38] sm:$0xff] %vm503, %v1325
        %v1328 = vld [vmem:[%s340] sm:$0xff]
        %v1329 = vld [vmem:[%s340 + $0x8] sm:$0xff]
        %v1330 = vld [vmem:[%s340 + $0x10] sm:$0xff]
        %v1331 = vld [vmem:[%s340 + $0x18] sm:$0xff]
        %v1332 = vld [vmem:[%s340 + $0x20] sm:$0xff]
        %v1333 = vld [vmem:[%s340 + $0x28] sm:$0xff]
        %v1334 = vld [vmem:[%s340 + $0x30] sm:$0xff]
        %v1335 = vld [vmem:[%s340 + $0x38] sm:$0xff]
        %v1336 = vld [vmem:[%s4] sm:$0xff]
        %v1337 = vld [vmem:[%s4 + $0x8] sm:$0xff]
        %v1338 = vld [vmem:[%s4 + $0x10] sm:$0xff]
        %v1339 = vld [vmem:[%s4 + $0x18] sm:$0xff]
        %v1340 = vld [vmem:[%s5] sm:$0x1]
        %v1342 = vlaneseq
        %v1343 = vshrl.u32 %v1342, 7
        %v1344 = vsub.s32 0, %v1343
        %v1345 = vrot.slane %v1340, %v1344
        %v1348 = vsel %vm503, %v1328, 0
        %v1351 = vsel %vm503, %v1329, 0
        %v1354 = vsel %vm503, %v1330, 0
        %v1357 = vsel %vm503, %v1331, 0
        %v1360 = vsel %vm503, %v1332, 0
        %v1363 = vsel %vm503, %v1333, 0
        %v1366 = vsel %vm503, %v1334, 0
        %v1369 = vsel %vm503, %v1335, 0
        %1371 = vmatprep.subr.mxu0 0.0
        %1372 = vmatpush1.msra.mxu0 %v1336
        %1373 = vmatprep.subr.mxu0 0.0
        %1374 = vmatpush1.msra.mxu0 %v1337
        %1375 = vmatprep.subr.mxu0 0.0
        %1376 = vmatpush1.msra.mxu0 %v1338
        %1377 = vmatprep.subr.mxu0 0.0
        %1378 = vmatpush1.msra.mxu0 %v1339
        %1379 = vmatprep.subr.mxu0 0.0
        %1380 = vmatpush1.msra.mxu0 0.0
        %1381 = vmatprep.subr.mxu0 0.0
        %1382 = vmatpush1.msra.mxu0 0.0
        %1383 = vmatprep.subr.mxu0 0.0
        %1384 = vmatpush1.msra.mxu0 0.0
        %1385 = vmatprep.subr.mxu0 0.0
        %1386 = vmatpush1.msra.mxu0 0.0
        %1387 = vmatprep.subr.mxu0 0.0
        %1388 = vmatpush1.msra.mxu0 0.0
        %1389 = vmatprep.subr.mxu0 0.0
        %1390 = vmatpush1.msra.mxu0 0.0
        %1391 = vmatprep.subr.mxu0 0.0
        %1392 = vmatpush1.msra.mxu0 0.0
        %1393 = vmatprep.subr.mxu0 0.0
        %1394 = vmatpush1.msra.mxu0 0.0
        %1395 = vmatprep.subr.mxu0 0.0
        %1396 = vmatpush1.msra.mxu0 0.0
        %1397 = vmatprep.subr.mxu0 0.0
        %1398 = vmatpush1.msra.mxu0 0.0
        %1399 = vmatprep.subr.mxu0 0.0
        %1400 = vmatpush1.msra.mxu0 0.0
        %1401 = vmatprep.subr.mxu0 0.0
        %1402 = vmatpush1.msra.mxu0 0.0
        %1403 = vmatprep.subr.mxu0 0.0
        %1404 = vmatpush1.msra.mxu0 0.0
        %1405 = vmatprep.subr.mxu0 0.0
        %1406 = vmatpush1.msra.mxu0 0.0
        %1407 = vmatprep.subr.mxu0 0.0
        %1408 = vmatpush1.msra.mxu0 0.0
        %1409 = vmatprep.subr.mxu0 0.0
        %1410 = vmatpush1.msra.mxu0 0.0
        %1411 = vmatprep.subr.mxu0 0.0
        %1412 = vmatpush1.msra.mxu0 0.0
        %1413 = vmatprep.subr.mxu0 0.0
        %1414 = vmatpush1.msra.mxu0 0.0
        %1415 = vmatprep.subr.mxu0 0.0
        %1416 = vmatpush1.msra.mxu0 0.0
        %1417 = vmatprep.subr.mxu0 0.0
        %1418 = vmatpush1.msra.mxu0 0.0
        %1419 = vmatprep.subr.mxu0 0.0
        %1420 = vmatpush1.msra.mxu0 0.0
        %1421 = vmatprep.subr.mxu0 0.0
        %1422 = vmatpush1.msra.mxu0 0.0
        %1423 = vmatprep.subr.mxu0 0.0
        %1424 = vmatpush1.msra.mxu0 0.0
        %1425 = vmatprep.subr.mxu0 0.0
        %1426 = vmatpush1.msra.mxu0 0.0
        %1427 = vmatprep.subr.mxu0 0.0
        %1428 = vmatpush1.msra.mxu0 0.0
        %1429 = vmatprep.subr.mxu0 0.0
        %1430 = vmatpush1.msra.mxu0 0.0
        %1431 = vmatprep.subr.mxu0 0.0
        %1432 = vmatpush1.msra.mxu0 0.0
        %1433 = vmatprep.subr.mxu0 0.0
        %1434 = vmatpush1.msra.mxu0 0.0
        %1435 = vmatprep.mubr.f32.mxu0 0.0
        %1436 = vmatmul.mubr.f32.gmra.mrb[0].mxu0 %v1348
        %v1437 = vpop.f32.mrb[0].mxu0
        %v1438 = vadd.f32 %v1345, %v1437
        %v1439 = vpop.f32.mrb[0].mxu0
        %1440 = vmatprep.mubr.f32.mxu0 0.0
        %1441 = vmatmul.mubr.f32.gmra.mrb[0].mxu0 %v1351
        %v1442 = vpop.f32.mrb[0].mxu0
        %v1443 = vadd.f32 %v1345, %v1442
        %v1444 = vpop.f32.mrb[0].mxu0
        %1445 = vmatprep.mubr.f32.mxu0 0.0
        %1446 = vmatmul.mubr.f32.gmra.mrb[0].mxu0 %v1354
        %v1447 = vpop.f32.mrb[0].mxu0
        %v1448 = vadd.f32 %v1345, %v1447
        %v1449 = vpop.f32.mrb[0].mxu0
        %1450 = vmatprep.mubr.f32.mxu0 0.0
        %1451 = vmatmul.mubr.f32.gmra.mrb[0].mxu0 %v1357
        %v1452 = vpop.f32.mrb[0].mxu0
        %v1453 = vadd.f32 %v1345, %v1452
        %v1454 = vpop.f32.mrb[0].mxu0
        %1455 = vmatprep.mubr.f32.mxu0 0.0
        %1456 = vmatmul.mubr.f32.gmra.mrb[0].mxu0 %v1360
        %v1457 = vpop.f32.mrb[0].mxu0
        %v1458 = vadd.f32 %v1345, %v1457
        %v1459 = vpop.f32.mrb[0].mxu0
        %1460 = vmatprep.mubr.f32.mxu0 0.0
        %1461 = vmatmul.mubr.f32.gmra.mrb[0].mxu0 %v1363
        %v1462 = vpop.f32.mrb[0].mxu0
        %v1463 = vadd.f32 %v1345, %v1462
        %v1464 = vpop.f32.mrb[0].mxu0
        %1465 = vmatprep.mubr.f32.mxu0 0.0
        %1466 = vmatmul.mubr.f32.gmra.mrb[0].mxu0 %v1366
        %v1467 = vpop.f32.mrb[0].mxu0
        %v1468 = vadd.f32 %v1345, %v1467
        %v1469 = vpop.f32.mrb[0].mxu0
        %1470 = vmatprep.mubr.f32.mxu0 0.0
        %1471 = vmatmul.mubr.f32.gmra.mrb[0].mxu0 %v1369
        %v1472 = vpop.f32.mrb[0].mxu0
        %v1473 = vadd.f32 %v1345, %v1472
        %v1474 = vpop.f32.mrb[0].mxu0
        %1475 = vdwg.mxu0
        %v1476 = vld [vmem:[%s334] sm:$0xff]
        %v1477 = vld [vmem:[%s334 + $0x8] sm:$0xff]
        %v1478 = vld [vmem:[%s334 + $0x10] sm:$0xff]
        %v1479 = vld [vmem:[%s334 + $0x18] sm:$0xff]
        %v1480 = vld [vmem:[%s334 + $0x20] sm:$0xff]
        %v1481 = vld [vmem:[%s334 + $0x28] sm:$0xff]
        %v1482 = vld [vmem:[%s334 + $0x30] sm:$0xff]
        %v1483 = vld [vmem:[%s334 + $0x38] sm:$0xff]
        %1485 = vset.pattern.permute.xlu0 0
        %1486 = vperm.xlu0 %1485, %v1476
        %v1487 = vpop.permute.xlu0 %1486
        %1490 = vset.pattern.permute.xlu0 0
        %1491 = vperm.xlu0 %1490, %v1477
        %v1492 = vpop.permute.xlu0 %1491
        %1495 = vset.pattern.permute.xlu0 0
        %1496 = vperm.xlu0 %1495, %v1478
        %v1497 = vpop.permute.xlu0 %1496
        %1500 = vset.pattern.permute.xlu0 0
        %1501 = vperm.xlu0 %1500, %v1479
        %v1502 = vpop.permute.xlu0 %1501
        %1505 = vset.pattern.permute.xlu0 0
        %1506 = vperm.xlu0 %1505, %v1480
        %v1507 = vpop.permute.xlu0 %1506
        %1510 = vset.pattern.permute.xlu0 0
        %1511 = vperm.xlu0 %1510, %v1481
        %v1512 = vpop.permute.xlu0 %1511
        %1515 = vset.pattern.permute.xlu0 0
        %1516 = vperm.xlu0 %1515, %v1482
        %v1517 = vpop.permute.xlu0 %1516
        %1520 = vset.pattern.permute.xlu0 0
        %1521 = vperm.xlu0 %1520, %v1483
        %v1522 = vpop.permute.xlu0 %1521
        %v1524 = vmul.f32 %v1438, %v1487
        %v1525 = vmul.f32 %v1443, %v1492
        %v1526 = vmul.f32 %v1448, %v1497
        %v1527 = vmul.f32 %v1453, %v1502
        %v1528 = vmul.f32 %v1458, %v1507
        %v1529 = vmul.f32 %v1463, %v1512
        %v1530 = vmul.f32 %v1468, %v1517
        %v1531 = vmul.f32 %v1473, %v1522
        %1532 = vst [vmem:[%s323] sm:$0xff] %v1524
        %1533 = vst [vmem:[%s323 + $0x8] sm:$0xff] %v1525
        %1534 = vst [vmem:[%s323 + $0x10] sm:$0xff] %v1526
        %1535 = vst [vmem:[%s323 + $0x18] sm:$0xff] %v1527
        %1536 = vst [vmem:[%s323 + $0x20] sm:$0xff] %v1528
        %1537 = vst [vmem:[%s323 + $0x28] sm:$0xff] %v1529
        %1538 = vst [vmem:[%s323 + $0x30] sm:$0xff] %v1530
        %1539 = vst [vmem:[%s323 + $0x38] sm:$0xff] %v1531
        %s1540 = smul.u32 8, %s23
        %p1541 = scmp.lt.s32.totalorder %s1540, 15
        %s1542 = scalar_select %p1541, %s1540, 15
        %s1543 = smul.addr %s1542, 8
        %s1544 = scalar_lea.vmem %s7, %s1543
        %s1545 = sand.u32 %s214, 1
        %s1546 = scalar_lea.sflag [#allocation4], %s1545
        %s1547 = sand.u32 %s214, 1
        %s1548 = smul.addr %s1547, 64
        %s1549 = scalar_lea.vmem [#allocation3], %s1548
        // Predicated region
        $region49: #{tpu_custom_call.1} parent=47 // pred_check
          %p1550 = pneg %p198
        $region50: #{tpu_custom_call.1} parent=47 // pred_check_branch
          %1552 = sbr.rel (%p1550) target = $region52
        $region51: #{tpu_custom_call.1} parent=47 // pred_region
          %s1553 = smul.u32 8, %s23
        $region52: #{tpu_custom_call.1} parent=47 // pred_fallthru
          _
        // Predicated region
        $region53: #{tpu_custom_call.1} parent=47 // pred_check
          %p1554 = pneg %p224
        $region54: #{tpu_custom_call.1} parent=47 // pred_check_branch
          %1556 = sbr.rel (%p1554) target = $region56
        $region55: #{tpu_custom_call.1} parent=47 // pred_region
          %s1557 = smul.u32 8, %s23
          %s1559 = ssub.s32 1024, 1024
          %1560 = vsyncadd %s1546, %s1559
          %s1561 = smul.addr %s1557, 128
          %s1562 = scalar_lea.hbm %s8, %s1561
          %s1563 = sshll.u32 %s1549, 4
          %s1564 = int_to_ptr.vmem [resolvable:$true] %s1563
          %1569 = dma.vmem_to_hbm [thread:$0]  %s1564, 1024, %s1562, %s1546, 128, 128, 8
        $region56: #{tpu_custom_call.1} parent=47 // pred_fallthru
          _
      $region48: #{tpu_custom_call.1} parent=5 // pred_fallthru
        _
      %p1570 = scmp.le.s32.totalorder 2, %s18
      // Predicated region
      $region57: #{tpu_custom_call.1} parent=5 // pred_check
        %p1571 = pneg %p1570
      $region58: #{tpu_custom_call.1} parent=5 // pred_check_branch
        %1573 = sbr.rel (%p1571) target = $region60
      $region59: #{tpu_custom_call.1} parent=5 // pred_region
        %s1574 = ssub.s32 %s18, 2
        // Predicated region
        $region61: #{tpu_custom_call.1} parent=59 // pred_check
          %p1575 = pneg %p204
        $region62: #{tpu_custom_call.1} parent=59 // pred_check_branch
          %1577 = sbr.rel (%p1575) target = $region64
        $region63: #{tpu_custom_call.1} parent=59 // pred_region
          %s1578 = smul.u32 8, %s24
          %p1579 = scmp.lt.s32.totalorder %s1578, 15
          %s1580 = scalar_select %p1579, %s1578, 15
          %s1581 = smul.addr %s1580, 8
          %s1582 = scalar_lea.vmem %s7, %s1581
        $region64: #{tpu_custom_call.1} parent=59 // pred_fallthru
          _
        // Predicated region
        $region65: #{tpu_custom_call.1} parent=59 // pred_check
          %p1583 = pneg %p230
        $region66: #{tpu_custom_call.1} parent=59 // pred_check_branch
          %1585 = sbr.rel (%p1583) target = $region68
        $region67: #{tpu_custom_call.1} parent=59 // pred_region
          %s1586 = sand.u32 %s215, 1
          %s1587 = scalar_lea.sflag [#allocation4], %s1586
          %s1588 = sand.u32 %s215, 1
          %s1589 = smul.addr %s1588, 64
          %s1590 = scalar_lea.vmem [#allocation3], %s1589
          %1591 = dma.done %s1587, 1024
        $region68: #{tpu_custom_call.1} parent=59 // pred_fallthru
          _
      $region60: #{tpu_custom_call.1} parent=5 // pred_fallthru
        _
    $region6: #{tpu_custom_call.1} parent=1 // loop_footer
      %s22 = sadd.s32 1, %s18
    $region7: #{tpu_custom_call.1} parent=1 // loop_footer_branch
      %17 = sbr.rel target = $region3
    $region8: #{tpu_custom_call.1} parent=1 // loop_exit
      _
    %1592 = vsyncpa [#allocation4], 1
    %s1593 = scalar_lea.sflag [#allocation4], 1
    %1594 = vsyncpa %s1593, 1

</llo_original>
